<compile_context>
chip_gen: v6e
topology: v6e:2x2x1
jax: 0.10.0
libtpu: 0.0.40
codegen_flags: <defaults>
</compile_context>

<pallas_src>
import functools

import jax
import jax.numpy as jnp
from jax.experimental import pallas as pl
from jax.experimental.pallas import tpu as pltpu

ACT_DTYPE = jnp.bfloat16       # activations / weights fed to the MXU
VMEM_LIMIT = 48 * 1024 * 1024  # explicit scoped-VMEM budget (fits v7x's 64 MiB)
PAD_IDX = 1                    # RoBERTa padding_idx for position embeddings
LN_EPS = 1e-5


def _tile(dim, candidates):
    """Largest candidate tile that divides `dim`; else the full dim (valid per (8,128) rule)."""
    for c in candidates:
        if dim % c == 0:
            return c
    return dim


_TM_CAND = (256, 128, 64, 32, 16, 8)
_TNK_CAND = (768, 512, 256, 128)


def _erf_approx(x):
    # Abramowitz & Stegun 7.1.26 (|err| < 1.5e-7): only exp / mul / add / where.
    a1, a2, a3, a4, a5 = 0.254829592, -0.284496736, 1.421413741, -1.453152027, 1.061405429
    pp = 0.3275911
    ax = jnp.abs(x)
    t = 1.0 / (1.0 + pp * ax)
    poly = ((((a5 * t + a4) * t + a3) * t + a2) * t + a1) * t
    y = 1.0 - poly * jnp.exp(-ax * ax)
    return jnp.where(x >= 0, y, -y)


def _gelu_exact(x):
    # exact (erf-based) GELU, matching HF RoBERTa's "gelu" activation
    return 0.5 * x * (1.0 + _erf_approx(x * 0.7071067811865476))


# ----------------------------- Pallas kernels -----------------------------

def _mm_bias_act_kernel(x_ref, w_ref, b_ref, o_ref, acc_ref, *, activation):
    kk = pl.program_id(2)

    @pl.when(kk == 0)
    def _init():
        acc_ref[...] = jnp.zeros_like(acc_ref)

    acc_ref[...] += jnp.dot(x_ref[...], w_ref[...], preferred_element_type=jnp.float32)

    @pl.when(kk == pl.num_programs(2) - 1)
    def _fin():
        y = acc_ref[...] + b_ref[...]          # bias in f32
        if activation == "relu":
            y = jnp.maximum(y, 0.0)
        elif activation == "gelu":
            y = _gelu_exact(y)
        o_ref[...] = y.astype(o_ref.dtype)


def linear(x, w, b, activation="none", out_dtype=None):
    """y = act(x @ w + b); x:[M,K] bf16, w:[K,N] bf16, b:[N] f32. Tiled M/N/K grid."""
    M, K = x.shape
    N = w.shape[1]
    out_dtype = out_dtype if out_dtype is not None else x.dtype
    tm = _tile(M, _TM_CAND)
    tn = _tile(N, _TNK_CAND)
    tk = _tile(K, _TNK_CAND)
    return pl.pallas_call(
        functools.partial(_mm_bias_act_kernel, activation=activation),
        grid=(M // tm, N // tn, K // tk),
        in_specs=[pl.BlockSpec((tm, tk), lambda i, j, k: (i, k)),
                  pl.BlockSpec((tk, tn), lambda i, j, k: (k, j)),
                  pl.BlockSpec((1, tn), lambda i, j, k: (0, j))],
        out_specs=pl.BlockSpec((tm, tn), lambda i, j, k: (i, j)),
        out_shape=jax.ShapeDtypeStruct((M, N), out_dtype),
        scratch_shapes=[pltpu.VMEM((tm, tn), jnp.float32)],
        compiler_params=pltpu.CompilerParams(
            dimension_semantics=("parallel", "parallel", "arbitrary"),
            vmem_limit_bytes=VMEM_LIMIT),
    )(x, w, b.reshape(1, N).astype(jnp.float32))


def _mm_res_ln_kernel(x_ref, w_ref, b_ref, r_ref, g_ref, bt_ref, o_ref, acc_ref, *, eps):
    kk = pl.program_id(1)

    @pl.when(kk == 0)
    def _init():
        acc_ref[...] = jnp.zeros_like(acc_ref)

    acc_ref[...] += jnp.dot(x_ref[...], w_ref[...], preferred_element_type=jnp.float32)

    @pl.when(kk == pl.num_programs(1) - 1)
    def _fin():
        y = acc_ref[...] + b_ref[...] + r_ref[...].astype(jnp.float32)
        mean = jnp.mean(y, axis=-1, keepdims=True)
        var = jnp.mean(jnp.square(y - mean), axis=-1, keepdims=True)
        yn = (y - mean) * jax.lax.rsqrt(var + eps)
        o_ref[...] = (yn * g_ref[...] + bt_ref[...]).astype(o_ref.dtype)


def linear_residual_layernorm(x, w, b, residual, gamma, beta, eps=LN_EPS):
    """LayerNorm(x @ w + b + residual); fused matmul epilogue. Full output width per tile."""
    M, K = x.shape
    N = w.shape[1]
    tm = _tile(M, _TM_CAND)
    tk = _tile(K, _TNK_CAND)
    return pl.pallas_call(
        functools.partial(_mm_res_ln_kernel, eps=eps),
        grid=(M // tm, K // tk),
        in_specs=[pl.BlockSpec((tm, tk), lambda i, k: (i, k)),
                  pl.BlockSpec((tk, N), lambda i, k: (k, 0)),
                  pl.BlockSpec((1, N), lambda i, k: (0, 0)),
                  pl.BlockSpec((tm, N), lambda i, k: (i, 0)),
                  pl.BlockSpec((1, N), lambda i, k: (0, 0)),
                  pl.BlockSpec((1, N), lambda i, k: (0, 0))],
        out_specs=pl.BlockSpec((tm, N), lambda i, k: (i, 0)),
        out_shape=jax.ShapeDtypeStruct((M, N), residual.dtype),
        scratch_shapes=[pltpu.VMEM((tm, N), jnp.float32)],
        compiler_params=pltpu.CompilerParams(
            dimension_semantics=("parallel", "arbitrary"),
            vmem_limit_bytes=VMEM_LIMIT),
    )(x, w, b.reshape(1, N).astype(jnp.float32), residual,
      gamma.reshape(1, N), beta.reshape(1, N))


def _add_ln_kernel(x_ref, r_ref, g_ref, b_ref, o_ref, *, eps):
    x = x_ref[...].astype(jnp.float32) + r_ref[...].astype(jnp.float32)
    mean = jnp.mean(x, axis=-1, keepdims=True)
    var = jnp.mean(jnp.square(x - mean), axis=-1, keepdims=True)
    y = (x - mean) * jax.lax.rsqrt(var + eps)
    o_ref[...] = (y * g_ref[...] + b_ref[...]).astype(o_ref.dtype)


def add_layernorm(x, residual, gamma, beta, eps=LN_EPS):
    """LayerNorm(x + residual) over the last axis; tiled over rows."""
    M, H = x.shape
    tm = _tile(M, _TM_CAND)
    return pl.pallas_call(
        functools.partial(_add_ln_kernel, eps=eps),
        grid=(M // tm,),
        in_specs=[pl.BlockSpec((tm, H), lambda i: (i, 0)),
                  pl.BlockSpec((tm, H), lambda i: (i, 0)),
                  pl.BlockSpec((1, H), lambda i: (0, 0)),
                  pl.BlockSpec((1, H), lambda i: (0, 0))],
        out_specs=pl.BlockSpec((tm, H), lambda i: (i, 0)),
        out_shape=jax.ShapeDtypeStruct((M, H), x.dtype),
        compiler_params=pltpu.CompilerParams(
            dimension_semantics=("parallel",),
            vmem_limit_bytes=VMEM_LIMIT),
    )(x, residual, gamma.reshape(1, H), beta.reshape(1, H))


def _attention_kernel(qkv_ref, mask_ref, o_ref, *, n_heads, scale):
    # qkv_ref: (1, S, 3H) bf16 — q/k/v column windows sliced per head inside the kernel.
    S, H3 = qkv_ref.shape[1], qkv_ref.shape[2]
    H = H3 // 3
    dH = H // n_heads
    qkv = qkv_ref[0]                     # [S, 3H]
    mask = mask_ref[0]                   # [1, S] additive mask, f32

    outs = []
    for hh in range(n_heads):            # static unroll over heads; all heads per grid step
        q = (qkv[:, hh * dH:(hh + 1) * dH].astype(jnp.float32) * scale).astype(qkv.dtype)
        k = qkv[:, H + hh * dH:H + (hh + 1) * dH]
        v = qkv[:, 2 * H + hh * dH:2 * H + (hh + 1) * dH]
        s = jax.lax.dot_general(q, k, (((1,), (1,)), ((), ())),
                                preferred_element_type=jnp.float32)   # [S, S] f32
        s = s + mask                                                  # broadcast over rows
        s_max = jnp.max(s, axis=-1, keepdims=True)
        p = jnp.exp(s - s_max)
        denom = jnp.sum(p, axis=-1, keepdims=True)
        p = p * pl.reciprocal(denom, approx=True)                     # EUP, off the VALU
        ctx = jnp.dot(p.astype(v.dtype), v, preferred_element_type=jnp.float32)  # [S, dH]
        outs.append(ctx)

    # lane-dense [S, H] output (single unmasked store)
    o_ref[0] = jnp.concatenate(outs, axis=-1).astype(o_ref.dtype)


def attention(qkv, add_mask, n_heads):
    """qkv: [B, S, 3H] bf16; add_mask: [B, 1, S] f32 additive. Returns ctx [B, S, H] bf16."""
    B, S, H3 = qkv.shape
    H = H3 // 3
    dH = H // n_heads
    scale = 1.0 / (dH ** 0.5)
    return pl.pallas_call(
        functools.partial(_attention_kernel, n_heads=n_heads, scale=scale),
        grid=(B,),
        in_specs=[pl.BlockSpec((1, S, H3), lambda b: (b, 0, 0)),
                  pl.BlockSpec((1, 1, S), lambda b: (b, 0, 0))],
        out_specs=pl.BlockSpec((1, S, H), lambda b: (b, 0, 0)),
        out_shape=jax.ShapeDtypeStruct((B, S, H), qkv.dtype),
        compiler_params=pltpu.CompilerParams(
            dimension_semantics=("parallel",),
            vmem_limit_bytes=VMEM_LIMIT),
    )(qkv, add_mask)


# ------------------------------ Parameters ------------------------------

def init_params(key, *, vocab, max_pos, hidden, n_layers, n_heads, inter, num_labels):
    def nrm(k, shape):
        return (jax.random.normal(k, shape, jnp.float32) * 0.02).astype(ACT_DTYPE)

    keys = iter(jax.random.split(key, 8 + 8 * n_layers))
    p = {}
    p["word_emb"] = nrm(next(keys), (vocab, hidden))      # len_tokenizer rows
    p["pos_emb"] = nrm(next(keys), (max_pos, hidden))
    p["type_emb"] = nrm(next(keys), (1, hidden))
    p["emb_ln_g"] = jnp.ones((hidden,), jnp.float32)
    p["emb_ln_b"] = jnp.zeros((hidden,), jnp.float32)
    layers = []
    for _ in range(n_layers):
        l = {}
        l["wqkv"] = nrm(next(keys), (hidden, 3 * hidden))       # fused Q|K|V projection
        l["bqkv"] = jnp.zeros((3 * hidden,), jnp.float32)
        l["wo"] = nrm(next(keys), (hidden, hidden))
        l["bo"] = jnp.zeros((hidden,), jnp.float32)
        l["w1"] = nrm(next(keys), (hidden, inter))
        l["b1"] = jnp.zeros((inter,), jnp.float32)
        l["w2"] = nrm(next(keys), (inter, hidden))
        l["b2"] = jnp.zeros((hidden,), jnp.float32)
        l["ln1_g"] = jnp.ones((hidden,), jnp.float32)
        l["ln1_b"] = jnp.zeros((hidden,), jnp.float32)
        l["ln2_g"] = jnp.ones((hidden,), jnp.float32)
        l["ln2_b"] = jnp.zeros((hidden,), jnp.float32)
        layers.append(l)
    p["layers"] = layers
    # classifier: Dropout -> Linear(H,H) -> ReLU -> Dropout -> Linear(H, num_labels)
    p["cls_w1"] = nrm(next(keys), (hidden, hidden))
    p["cls_b1"] = jnp.zeros((hidden,), jnp.float32)
    p["cls_w2"] = nrm(next(keys), (hidden, num_labels))
    p["cls_b2"] = jnp.zeros((num_labels,), jnp.float32)
    return p


# ------------------------------ Forward pass ------------------------------

def roberta_classifier_forward(params, input_ids, attention_mask, *, n_heads):
    B, S = input_ids.shape
    H = params["word_emb"].shape[1]
    H3 = 3 * H

    # TODO(synk): embedding gathers (jnp.take) stay in plain JAX; no clean single-kernel
    # Pallas gather for these token-indexed tables.
    word = jnp.take(params["word_emb"], input_ids, axis=0)              # [B,S,H] bf16
    # RoBERTa position ids: pad tokens -> padding_idx, real tokens count from padding_idx+1
    mask_i = attention_mask.astype(jnp.int32)
    position_ids = jnp.cumsum(mask_i, axis=1) * mask_i + PAD_IDX
    pos = jnp.take(params["pos_emb"], position_ids, axis=0)             # [B,S,H] bf16
    typ = params["type_emb"][0][None, None, :]                          # token_type_ids=None -> type 0

    h = add_layernorm(word.reshape(B * S, H), (pos + typ).reshape(B * S, H),
                      params["emb_ln_g"], params["emb_ln_b"])           # [B*S, H] bf16

    add_mask = ((1.0 - attention_mask.astype(jnp.float32)) * -1e9).reshape(B, 1, S)

    for l in params["layers"]:
        qkv = linear(h, l["wqkv"], l["bqkv"])                           # [B*S, 3H]
        ctx = attention(qkv.reshape(B, S, H3), add_mask, n_heads)       # [B, S, H]
        h = linear_residual_layernorm(ctx.reshape(B * S, H), l["wo"], l["bo"],
                                      h, l["ln1_g"], l["ln1_b"])        # attn out + res + LN
        ffn = linear(h, l["w1"], l["b1"], activation="gelu")            # [B*S, inter]
        h = linear_residual_layernorm(ffn, l["w2"], l["b2"],
                                      h, l["ln2_g"], l["ln2_b"])        # ffn out + res + LN

    last_hidden = h.reshape(B, S, H)
    pooled = last_hidden[:, 0, :]                                       # CLS token [B, H]

    # classifier head (Dropout layers are identity in eval mode); pad rows to a sublane
    # multiple so the tiny matmuls use clean (8,128) tiles.
    Mp = max(8, -(-B // 8) * 8)
    pooled_p = jnp.zeros((Mp, H), pooled.dtype).at[:B].set(pooled)
    hid = linear(pooled_p, params["cls_w1"], params["cls_b1"], activation="relu")
    logits_p = linear(hid, params["cls_w2"], params["cls_b2"], out_dtype=jnp.float32)
    return logits_p[:B]                                                 # [B, num_labels] f32


# ------------------------------ Main ------------------------------

if __name__ == "__main__":
    B, S, H = 2, 8, 32
    n_heads, inter, n_layers = 4, 64, 2
    vocab, max_pos, num_labels = 100, 64, 3

    key = jax.random.PRNGKey(0)
    pkey, ikey = jax.random.split(key)
    params = init_params(pkey, vocab=vocab, max_pos=max_pos, hidden=H,
                         n_layers=n_layers, n_heads=n_heads, inter=inter,
                         num_labels=num_labels)

    input_ids = jax.random.randint(ikey, (B, S), 0, vocab, dtype=jnp.int32)
    attention_mask = jnp.ones((B, S), jnp.int32).at[1, 6:].set(0)  # a bit of padding

    fwd = jax.jit(functools.partial(roberta_classifier_forward, n_heads=n_heads))
    logits = fwd(params, input_ids, attention_mask)
    jax.block_until_ready(logits)
    assert logits.shape == (B, num_labels)
    assert bool(jnp.all(jnp.isfinite(logits)))
    print("KERNEL_OK")
</pallas_src>

<mosaic_0001>
module attributes {stable_mosaic.version = 11 : i64} {
  func.func @_mm_bias_act_kernel(%arg0: i32, %arg1: i32, %arg2: i32, %arg3: memref<16x32xbf16, #tpu.memory_space<vmem>>, %arg4: memref<32x96xbf16, #tpu.memory_space<vmem>>, %arg5: memref<1x96xf32, #tpu.memory_space<vmem>>, %arg6: memref<16x96xbf16, #tpu.memory_space<vmem>>, %arg7: memref<16x96xf32, #tpu.memory_space<vmem>>) attributes {dimension_semantics = [#tpu.dimension_semantics<parallel>, #tpu.dimension_semantics<parallel>, #tpu.dimension_semantics<arbitrary>], iteration_bounds = array<i64: 1, 1, 1>, scalar_prefetch = 0 : i64, scratch_operands = 1 : i64, tpu.core_type = #tpu.core_type<tc>, window_params = [{transform_indices = @transform_0, window_bounds = array<i64: 16, 32>}, {transform_indices = @transform_1, window_bounds = array<i64: 32, 96>}, {transform_indices = @transform_2, window_bounds = array<i64: 1, 96>}, {transform_indices = @transform_3, window_bounds = array<i64: 16, 96>}]} {
    %c0_i32 = arith.constant 0 : i32
    %0 = arith.cmpi eq, %arg2, %c0_i32 : i32
    %1 = arith.extui %0 : i1 to i32
    %c0_i32_0 = arith.constant 0 : i32
    %2 = arith.cmpi ne, %1, %c0_i32_0 : i32
    scf.if %2 {
      %cst_10 = arith.constant 0.000000e+00 : f32
      %12 = vector.broadcast %cst_10 : f32 to vector<16x96xf32>
      %c0_11 = arith.constant 0 : index
      %c0_12 = arith.constant 0 : index
      %13 = vector.load %arg7[%c0_11, %c0_12] : memref<16x96xf32, #tpu.memory_space<vmem>>, vector<16x96xf32>
      tpu.vector_store %arg7[%c0_11, %c0_12], %12 {strides = array<i32>} : memref<16x96xf32, #tpu.memory_space<vmem>>, vector<16x96xf32>,
    } else {
    }
    %c0 = arith.constant 0 : index
    %c0_1 = arith.constant 0 : index
    %3 = vector.load %arg7[%c0, %c0_1] : memref<16x96xf32, #tpu.memory_space<vmem>>, vector<16x96xf32>
    %c0_2 = arith.constant 0 : index
    %c0_3 = arith.constant 0 : index
    %4 = vector.load %arg3[%c0_2, %c0_3] : memref<16x32xbf16, #tpu.memory_space<vmem>>, vector<16x32xbf16>
    %c0_4 = arith.constant 0 : index
    %c0_5 = arith.constant 0 : index
    %5 = vector.load %arg4[%c0_4, %c0_5] : memref<32x96xbf16, #tpu.memory_space<vmem>>, vector<32x96xbf16>
    %cst = arith.constant dense<0.000000e+00> : vector<16x96xf32>
    %6 = tpu.matmul %4, %5, %cst {dimension_numbers = #tpu.dot_dimension_numbers<[1], [0], [0], [1], [0, 0, 1, 1], [], []>} : vector<16x32xbf16>, vector<32x96xbf16>, vector<16x96xf32> -> vector<16x96xf32>
    %7 = arith.addf %3, %6 : vector<16x96xf32>
    %c0_6 = arith.constant 0 : index
    %c0_7 = arith.constant 0 : index
    %8 = vector.load %arg7[%c0_6, %c0_7] : memref<16x96xf32, #tpu.memory_space<vmem>>, vector<16x96xf32>
    tpu.vector_store %arg7[%c0_6, %c0_7], %7 {strides = array<i32>} : memref<16x96xf32, #tpu.memory_space<vmem>>, vector<16x96xf32>,
    %c0_i32_8 = arith.constant 0 : i32
    %9 = arith.cmpi eq, %arg2, %c0_i32_8 : i32
    %10 = arith.extui %9 : i1 to i32
    %c0_i32_9 = arith.constant 0 : i32
    %11 = arith.cmpi ne, %10, %c0_i32_9 : i32
    scf.if %11 {
      %c0_10 = arith.constant 0 : index
      %c0_11 = arith.constant 0 : index
      %12 = vector.load %arg7[%c0_10, %c0_11] : memref<16x96xf32, #tpu.memory_space<vmem>>, vector<16x96xf32>
      %c0_12 = arith.constant 0 : index
      %c0_13 = arith.constant 0 : index
      %13 = vector.load %arg5[%c0_12, %c0_13] : memref<1x96xf32, #tpu.memory_space<vmem>>, vector<1x96xf32>
      %14 = vector.broadcast %13 : vector<1x96xf32> to vector<16x96xf32>
      %15 = arith.addf %12, %14 : vector<16x96xf32>
      %16 = arith.truncf %15 : vector<16x96xf32> to vector<16x96xbf16>
      %c0_14 = arith.constant 0 : index
      %c0_15 = arith.constant 0 : index
      %17 = vector.load %arg6[%c0_14, %c0_15] : memref<16x96xbf16, #tpu.memory_space<vmem>>, vector<16x96xbf16>
      tpu.vector_store %arg6[%c0_14, %c0_15], %16 {strides = array<i32>} : memref<16x96xbf16, #tpu.memory_space<vmem>>, vector<16x96xbf16>,
    } else {
    }
    return
  }
  func.func @transform_0(%arg0: i32, %arg1: i32, %arg2: i32) -> (i32, i32) {
    %c0_i32 = arith.constant 0 : i32
    return %arg0, %arg2 : i32, i32
  }
  func.func @transform_1(%arg0: i32, %arg1: i32, %arg2: i32) -> (i32, i32) {
    %c0_i32 = arith.constant 0 : i32
    return %arg2, %arg1 : i32, i32
  }
  func.func @transform_2(%arg0: i32, %arg1: i32, %arg2: i32) -> (i32, i32) {
    %c0_i32 = arith.constant 0 : i32
    %c0_i32_0 = arith.constant 0 : i32
    return %c0_i32, %arg1 : i32, i32
  }
  func.func @transform_3(%arg0: i32, %arg1: i32, %arg2: i32) -> (i32, i32) {
    %c0_i32 = arith.constant 0 : i32
    return %arg0, %arg1 : i32, i32
  }
}

module attributes {stable_mosaic.version = 11 : i64} {
  func.func @_add_ln_kernel(%arg0: i32, %arg1: memref<16x32xbf16, #tpu.memory_space<vmem>>, %arg2: memref<16x32xbf16, #tpu.memory_space<vmem>>, %arg3: memref<1x32xf32, #tpu.memory_space<vmem>>, %arg4: memref<1x32xf32, #tpu.memory_space<vmem>>, %arg5: memref<16x32xbf16, #tpu.memory_space<vmem>>) attributes {dimension_semantics = [#tpu.dimension_semantics<parallel>], iteration_bounds = array<i64: 1>, scalar_prefetch = 0 : i64, scratch_operands = 0 : i64, tpu.core_type = #tpu.core_type<tc>, window_params = [{transform_indices = @transform_0, window_bounds = array<i64: 16, 32>}, {transform_indices = @transform_1, window_bounds = array<i64: 16, 32>}, {pipeline_mode = #tpu.pipeline_mode<synchronous>, transform_indices = @transform_2, window_bounds = array<i64: 1, 32>}, {pipeline_mode = #tpu.pipeline_mode<synchronous>, transform_indices = @transform_3, window_bounds = array<i64: 1, 32>}, {transform_indices = @transform_4, window_bounds = array<i64: 16, 32>}]} {
    %c0 = arith.constant 0 : index
    %c0_0 = arith.constant 0 : index
    %0 = vector.load %arg1[%c0, %c0_0] : memref<16x32xbf16, #tpu.memory_space<vmem>>, vector<16x32xbf16>
    %1 = arith.extf %0 : vector<16x32xbf16> to vector<16x32xf32>
    %c0_1 = arith.constant 0 : index
    %c0_2 = arith.constant 0 : index
    %2 = vector.load %arg2[%c0_1, %c0_2] : memref<16x32xbf16, #tpu.memory_space<vmem>>, vector<16x32xbf16>
    %3 = arith.extf %2 : vector<16x32xbf16> to vector<16x32xf32>
    %4 = arith.addf %1, %3 : vector<16x32xf32>
    %cst = arith.constant dense<0.000000e+00> : vector<16xf32>
    %5 = vector.multi_reduction <add>, %4, %cst [1] : vector<16x32xf32> to vector<16xf32>
    %6 = vector.shape_cast %5 : vector<16xf32> to vector<16x1xf32>
    %cst_3 = arith.constant 3.200000e+01 : f32
    %7 = vector.broadcast %cst_3 : f32 to vector<16x1xf32>
    %8 = arith.divf %6, %7 : vector<16x1xf32>
    %9 = vector.broadcast %8 : vector<16x1xf32> to vector<16x32xf32>
    %10 = arith.subf %4, %9 : vector<16x32xf32>
    %11 = arith.mulf %10, %10 : vector<16x32xf32>
    %cst_4 = arith.constant dense<0.000000e+00> : vector<16xf32>
    %12 = vector.multi_reduction <add>, %11, %cst_4 [1] : vector<16x32xf32> to vector<16xf32>
    %13 = vector.shape_cast %12 : vector<16xf32> to vector<16x1xf32>
    %cst_5 = arith.constant 3.200000e+01 : f32
    %14 = vector.broadcast %cst_5 : f32 to vector<16x1xf32>
    %15 = arith.divf %13, %14 : vector<16x1xf32>
    %16 = vector.broadcast %8 : vector<16x1xf32> to vector<16x32xf32>
    %17 = arith.subf %4, %16 : vector<16x32xf32>
    %cst_6 = arith.constant 9.99999974E-6 : f32
    %18 = vector.broadcast %cst_6 : f32 to vector<16x1xf32>
    %19 = arith.addf %15, %18 : vector<16x1xf32>
    %20 = math.rsqrt %19 : vector<16x1xf32>
    %21 = vector.broadcast %20 : vector<16x1xf32> to vector<16x32xf32>
    %22 = arith.mulf %17, %21 : vector<16x32xf32>
    %c0_7 = arith.constant 0 : index
    %c0_8 = arith.constant 0 : index
    %23 = vector.load %arg3[%c0_7, %c0_8] : memref<1x32xf32, #tpu.memory_space<vmem>>, vector<1x32xf32>
    %24 = vector.broadcast %23 : vector<1x32xf32> to vector<16x32xf32>
    %25 = arith.mulf %22, %24 : vector<16x32xf32>
    %c0_9 = arith.constant 0 : index
    %c0_10 = arith.constant 0 : index
    %26 = vector.load %arg4[%c0_9, %c0_10] : memref<1x32xf32, #tpu.memory_space<vmem>>, vector<1x32xf32>
    %27 = vector.broadcast %26 : vector<1x32xf32> to vector<16x32xf32>
    %28 = arith.addf %25, %27 : vector<16x32xf32>
    %29 = arith.truncf %28 : vector<16x32xf32> to vector<16x32xbf16>
    %c0_11 = arith.constant 0 : index
    %c0_12 = arith.constant 0 : index
    %30 = vector.load %arg5[%c0_11, %c0_12] : memref<16x32xbf16, #tpu.memory_space<vmem>>, vector<16x32xbf16>
    tpu.vector_store %arg5[%c0_11, %c0_12], %29 {strides = array<i32>} : memref<16x32xbf16, #tpu.memory_space<vmem>>, vector<16x32xbf16>,
    return
  }
  func.func @transform_0(%arg0: i32) -> (i32, i32) {
    %c0_i32 = arith.constant 0 : i32
    %c0_i32_0 = arith.constant 0 : i32
    return %arg0, %c0_i32 : i32, i32
  }
  func.func @transform_1(%arg0: i32) -> (i32, i32) {
    %c0_i32 = arith.constant 0 : i32
    %c0_i32_0 = arith.constant 0 : i32
    return %arg0, %c0_i32 : i32, i32
  }
  func.func @transform_2(%arg0: i32) -> (i32, i32) {
    %c0_i32 = arith.constant 0 : i32
    %c0_i32_0 = arith.constant 0 : i32
    %c0_i32_1 = arith.constant 0 : i32
    return %c0_i32, %c0_i32_0 : i32, i32
  }
  func.func @transform_3(%arg0: i32) -> (i32, i32) {
    %c0_i32 = arith.constant 0 : i32
    %c0_i32_0 = arith.constant 0 : i32
    %c0_i32_1 = arith.constant 0 : i32
    return %c0_i32, %c0_i32_0 : i32, i32
  }
  func.func @transform_4(%arg0: i32) -> (i32, i32) {
    %c0_i32 = arith.constant 0 : i32
    %c0_i32_0 = arith.constant 0 : i32
    return %arg0, %c0_i32 : i32, i32
  }
}

module attributes {stable_mosaic.version = 11 : i64} {
  func.func @_attention_kernel(%arg0: i32, %arg1: memref<1x8x96xbf16, #tpu.memory_space<vmem>>, %arg2: memref<1x1x8xf32, #tpu.memory_space<vmem>>, %arg3: memref<1x8x32xbf16, #tpu.memory_space<vmem>>) attributes {dimension_semantics = [#tpu.dimension_semantics<parallel>], iteration_bounds = array<i64: 2>, scalar_prefetch = 0 : i64, scratch_operands = 0 : i64, tpu.core_type = #tpu.core_type<tc>, window_params = [{transform_indices = @transform_0, window_bounds = array<i64: 1, 8, 96>}, {transform_indices = @transform_1, window_bounds = array<i64: 1, 1, 8>}, {transform_indices = @transform_2, window_bounds = array<i64: 1, 8, 32>}]} {
    %c0 = arith.constant 0 : index
    %c0_0 = arith.constant 0 : index
    %c0_1 = arith.constant 0 : index
    %0 = vector.load %arg1[%c0, %c0_0, %c0_1] : memref<1x8x96xbf16, #tpu.memory_space<vmem>>, vector<1x8x96xbf16>
    %1 = vector.shape_cast %0 : vector<1x8x96xbf16> to vector<8x96xbf16>
    %c0_2 = arith.constant 0 : index
    %c0_3 = arith.constant 0 : index
    %c0_4 = arith.constant 0 : index
    %2 = vector.load %arg2[%c0_2, %c0_3, %c0_4] : memref<1x1x8xf32, #tpu.memory_space<vmem>>, vector<1x1x8xf32>
    %3 = vector.shape_cast %2 : vector<1x1x8xf32> to vector<1x8xf32>
    %4 = vector.extract_strided_slice %1 {offsets = [0, 0], sizes = [8, 8], strides = [1, 1]} : vector<8x96xbf16> to vector<8x8xbf16>
    %5 = arith.extf %4 : vector<8x8xbf16> to vector<8x8xf32>
    %cst = arith.constant 0.353553385 : f32
    %6 = vector.broadcast %cst : f32 to vector<8x8xf32>
    %7 = arith.mulf %5, %6 : vector<8x8xf32>
    %8 = arith.truncf %7 : vector<8x8xf32> to vector<8x8xbf16>
    %9 = vector.extract_strided_slice %1 {offsets = [0, 32], sizes = [8, 8], strides = [1, 1]} : vector<8x96xbf16> to vector<8x8xbf16>
    %10 = vector.extract_strided_slice %1 {offsets = [0, 64], sizes = [8, 8], strides = [1, 1]} : vector<8x96xbf16> to vector<8x8xbf16>
    %cst_5 = arith.constant dense<0.000000e+00> : vector<8x8xf32>
    %11 = tpu.matmul %8, %9, %cst_5 {dimension_numbers = #tpu.dot_dimension_numbers<[1], [1], [0], [0], [0, 0, 1, 0], [], []>} : vector<8x8xbf16>, vector<8x8xbf16>, vector<8x8xf32> -> vector<8x8xf32>
    %12 = vector.broadcast %3 : vector<1x8xf32> to vector<8x8xf32>
    %13 = arith.addf %11, %12 : vector<8x8xf32>
    %cst_6 = arith.constant dense<0xFF800000> : vector<8xf32>
    %14 = vector.multi_reduction <maximumf>, %13, %cst_6 [1] : vector<8x8xf32> to vector<8xf32>
    %15 = vector.shape_cast %14 : vector<8xf32> to vector<8x1xf32>
    %16 = vector.broadcast %15 : vector<8x1xf32> to vector<8x8xf32>
    %17 = arith.subf %13, %16 : vector<8x8xf32>
    %18 = math.exp %17 : vector<8x8xf32>
    %cst_7 = arith.constant dense<0.000000e+00> : vector<8xf32>
    %19 = vector.multi_reduction <add>, %18, %cst_7 [1] : vector<8x8xf32> to vector<8xf32>
    %20 = vector.shape_cast %19 : vector<8xf32> to vector<8x1xf32>
    %21 = tpu.reciprocal %20 {approx = true} : vector<8x1xf32> -> vector<8x1xf32>
    %22 = vector.broadcast %21 : vector<8x1xf32> to vector<8x8xf32>
    %23 = arith.mulf %18, %22 : vector<8x8xf32>
    %24 = arith.truncf %23 : vector<8x8xf32> to vector<8x8xbf16>
    %cst_8 = arith.constant dense<0.000000e+00> : vector<8x8xf32>
    %25 = tpu.matmul %24, %10, %cst_8 {dimension_numbers = #tpu.dot_dimension_numbers<[1], [0], [0], [1], [0, 0, 1, 1], [], []>} : vector<8x8xbf16>, vector<8x8xbf16>, vector<8x8xf32> -> vector<8x8xf32>
    %26 = vector.extract_strided_slice %1 {offsets = [0, 8], sizes = [8, 8], strides = [1, 1]} : vector<8x96xbf16> to vector<8x8xbf16>
    %27 = arith.extf %26 : vector<8x8xbf16> to vector<8x8xf32>
    %cst_9 = arith.constant 0.353553385 : f32
    %28 = vector.broadcast %cst_9 : f32 to vector<8x8xf32>
    %29 = arith.mulf %27, %28 : vector<8x8xf32>
    %30 = arith.truncf %29 : vector<8x8xf32> to vector<8x8xbf16>
    %31 = vector.extract_strided_slice %1 {offsets = [0, 40], sizes = [8, 8], strides = [1, 1]} : vector<8x96xbf16> to vector<8x8xbf16>
    %32 = vector.extract_strided_slice %1 {offsets = [0, 72], sizes = [8, 8], strides = [1, 1]} : vector<8x96xbf16> to vector<8x8xbf16>
    %cst_10 = arith.constant dense<0.000000e+00> : vector<8x8xf32>
    %33 = tpu.matmul %30, %31, %cst_10 {dimension_numbers = #tpu.dot_dimension_numbers<[1], [1], [0], [0], [0, 0, 1, 0], [], []>} : vector<8x8xbf16>, vector<8x8xbf16>, vector<8x8xf32> -> vector<8x8xf32>
    %34 = vector.broadcast %3 : vector<1x8xf32> to vector<8x8xf32>
    %35 = arith.addf %33, %34 : vector<8x8xf32>
    %cst_11 = arith.constant dense<0xFF800000> : vector<8xf32>
    %36 = vector.multi_reduction <maximumf>, %35, %cst_11 [1] : vector<8x8xf32> to vector<8xf32>
    %37 = vector.shape_cast %36 : vector<8xf32> to vector<8x1xf32>
    %38 = vector.broadcast %37 : vector<8x1xf32> to vector<8x8xf32>
    %39 = arith.subf %35, %38 : vector<8x8xf32>
    %40 = math.exp %39 : vector<8x8xf32>
    %cst_12 = arith.constant dense<0.000000e+00> : vector<8xf32>
    %41 = vector.multi_reduction <add>, %40, %cst_12 [1] : vector<8x8xf32> to vector<8xf32>
    %42 = vector.shape_cast %41 : vector<8xf32> to vector<8x1xf32>
    %43 = tpu.reciprocal %42 {approx = true} : vector<8x1xf32> -> vector<8x1xf32>
    %44 = vector.broadcast %43 : vector<8x1xf32> to vector<8x8xf32>
    %45 = arith.mulf %40, %44 : vector<8x8xf32>
    %46 = arith.truncf %45 : vector<8x8xf32> to vector<8x8xbf16>
    %cst_13 = arith.constant dense<0.000000e+00> : vector<8x8xf32>
    %47 = tpu.matmul %46, %32, %cst_13 {dimension_numbers = #tpu.dot_dimension_numbers<[1], [0], [0], [1], [0, 0, 1, 1], [], []>} : vector<8x8xbf16>, vector<8x8xbf16>, vector<8x8xf32> -> vector<8x8xf32>
    %48 = vector.extract_strided_slice %1 {offsets = [0, 16], sizes = [8, 8], strides = [1, 1]} : vector<8x96xbf16> to vector<8x8xbf16>
    %49 = arith.extf %48 : vector<8x8xbf16> to vector<8x8xf32>
    %cst_14 = arith.constant 0.353553385 : f32
    %50 = vector.broadcast %cst_14 : f32 to vector<8x8xf32>
    %51 = arith.mulf %49, %50 : vector<8x8xf32>
    %52 = arith.truncf %51 : vector<8x8xf32> to vector<8x8xbf16>
    %53 = vector.extract_strided_slice %1 {offsets = [0, 48], sizes = [8, 8], strides = [1, 1]} : vector<8x96xbf16> to vector<8x8xbf16>
    %54 = vector.extract_strided_slice %1 {offsets = [0, 80], sizes = [8, 8], strides = [1, 1]} : vector<8x96xbf16> to vector<8x8xbf16>
    %cst_15 = arith.constant dense<0.000000e+00> : vector<8x8xf32>
    %55 = tpu.matmul %52, %53, %cst_15 {dimension_numbers = #tpu.dot_dimension_numbers<[1], [1], [0], [0], [0, 0, 1, 0], [], []>} : vector<8x8xbf16>, vector<8x8xbf16>, vector<8x8xf32> -> vector<8x8xf32>
    %56 = vector.broadcast %3 : vector<1x8xf32> to vector<8x8xf32>
    %57 = arith.addf %55, %56 : vector<8x8xf32>
    %cst_16 = arith.constant dense<0xFF800000> : vector<8xf32>
    %58 = vector.multi_reduction <maximumf>, %57, %cst_16 [1] : vector<8x8xf32> to vector<8xf32>
    %59 = vector.shape_cast %58 : vector<8xf32> to vector<8x1xf32>
    %60 = vector.broadcast %59 : vector<8x1xf32> to vector<8x8xf32>
    %61 = arith.subf %57, %60 : vector<8x8xf32>
    %62 = math.exp %61 : vector<8x8xf32>
    %cst_17 = arith.constant dense<0.000000e+00> : vector<8xf32>
    %63 = vector.multi_reduction <add>, %62, %cst_17 [1] : vector<8x8xf32> to vector<8xf32>
    %64 = vector.shape_cast %63 : vector<8xf32> to vector<8x1xf32>
    %65 = tpu.reciprocal %64 {approx = true} : vector<8x1xf32> -> vector<8x1xf32>
    %66 = vector.broadcast %65 : vector<8x1xf32> to vector<8x8xf32>
    %67 = arith.mulf %62, %66 : vector<8x8xf32>
    %68 = arith.truncf %67 : vector<8x8xf32> to vector<8x8xbf16>
    %cst_18 = arith.constant dense<0.000000e+00> : vector<8x8xf32>
    %69 = tpu.matmul %68, %54, %cst_18 {dimension_numbers = #tpu.dot_dimension_numbers<[1], [0], [0], [1], [0, 0, 1, 1], [], []>} : vector<8x8xbf16>, vector<8x8xbf16>, vector<8x8xf32> -> vector<8x8xf32>
    %70 = vector.extract_strided_slice %1 {offsets = [0, 24], sizes = [8, 8], strides = [1, 1]} : vector<8x96xbf16> to vector<8x8xbf16>
    %71 = arith.extf %70 : vector<8x8xbf16> to vector<8x8xf32>
    %cst_19 = arith.constant 0.353553385 : f32
    %72 = vector.broadcast %cst_19 : f32 to vector<8x8xf32>
    %73 = arith.mulf %71, %72 : vector<8x8xf32>
    %74 = arith.truncf %73 : vector<8x8xf32> to vector<8x8xbf16>
    %75 = vector.extract_strided_slice %1 {offsets = [0, 56], sizes = [8, 8], strides = [1, 1]} : vector<8x96xbf16> to vector<8x8xbf16>
    %76 = vector.extract_strided_slice %1 {offsets = [0, 88], sizes = [8, 8], strides = [1, 1]} : vector<8x96xbf16> to vector<8x8xbf16>
    %cst_20 = arith.constant dense<0.000000e+00> : vector<8x8xf32>
    %77 = tpu.matmul %74, %75, %cst_20 {dimension_numbers = #tpu.dot_dimension_numbers<[1], [1], [0], [0], [0, 0, 1, 0], [], []>} : vector<8x8xbf16>, vector<8x8xbf16>, vector<8x8xf32> -> vector<8x8xf32>
    %78 = vector.broadcast %3 : vector<1x8xf32> to vector<8x8xf32>
    %79 = arith.addf %77, %78 : vector<8x8xf32>
    %cst_21 = arith.constant dense<0xFF800000> : vector<8xf32>
    %80 = vector.multi_reduction <maximumf>, %79, %cst_21 [1] : vector<8x8xf32> to vector<8xf32>
    %81 = vector.shape_cast %80 : vector<8xf32> to vector<8x1xf32>
    %82 = vector.broadcast %81 : vector<8x1xf32> to vector<8x8xf32>
    %83 = arith.subf %79, %82 : vector<8x8xf32>
    %84 = math.exp %83 : vector<8x8xf32>
    %cst_22 = arith.constant dense<0.000000e+00> : vector<8xf32>
    %85 = vector.multi_reduction <add>, %84, %cst_22 [1] : vector<8x8xf32> to vector<8xf32>
    %86 = vector.shape_cast %85 : vector<8xf32> to vector<8x1xf32>
    %87 = tpu.reciprocal %86 {approx = true} : vector<8x1xf32> -> vector<8x1xf32>
    %88 = vector.broadcast %87 : vector<8x1xf32> to vector<8x8xf32>
    %89 = arith.mulf %84, %88 : vector<8x8xf32>
    %90 = arith.truncf %89 : vector<8x8xf32> to vector<8x8xbf16>
    %cst_23 = arith.constant dense<0.000000e+00> : vector<8x8xf32>
    %91 = tpu.matmul %90, %76, %cst_23 {dimension_numbers = #tpu.dot_dimension_numbers<[1], [0], [0], [1], [0, 0, 1, 1], [], []>} : vector<8x8xbf16>, vector<8x8xbf16>, vector<8x8xf32> -> vector<8x8xf32>
    %92 = tpu.concatenate %25, %47, %69, %91 in 1 : vector<8x8xf32>, vector<8x8xf32>, vector<8x8xf32>, vector<8x8xf32> -> vector<8x32xf32>
    %93 = arith.truncf %92 : vector<8x32xf32> to vector<8x32xbf16>
    %c0_24 = arith.constant 0 : index
    %c0_25 = arith.constant 0 : index
    %c0_26 = arith.constant 0 : index
    %94 = vector.load %arg3[%c0_24, %c0_25, %c0_26] : memref<1x8x32xbf16, #tpu.memory_space<vmem>>, vector<1x8x32xbf16>
    %95 = vector.shape_cast %94 : vector<1x8x32xbf16> to vector<8x32xbf16>
    %96 = vector.shape_cast %93 : vector<8x32xbf16> to vector<1x8x32xbf16>
    tpu.vector_store %arg3[%c0_24, %c0_25, %c0_26], %96 {strides = array<i32>} : memref<1x8x32xbf16, #tpu.memory_space<vmem>>, vector<1x8x32xbf16>,
    return
  }
  func.func @transform_0(%arg0: i32) -> (i32, i32, i32) {
    %c0_i32 = arith.constant 0 : i32
    %c0_i32_0 = arith.constant 0 : i32
    %c0_i32_1 = arith.constant 0 : i32
    return %arg0, %c0_i32, %c0_i32_0 : i32, i32, i32
  }
  func.func @transform_1(%arg0: i32) -> (i32, i32, i32) {
    %c0_i32 = arith.constant 0 : i32
    %c0_i32_0 = arith.constant 0 : i32
    %c0_i32_1 = arith.constant 0 : i32
    return %arg0, %c0_i32, %c0_i32_0 : i32, i32, i32
  }
  func.func @transform_2(%arg0: i32) -> (i32, i32, i32) {
    %c0_i32 = arith.constant 0 : i32
    %c0_i32_0 = arith.constant 0 : i32
    %c0_i32_1 = arith.constant 0 : i32
    return %arg0, %c0_i32, %c0_i32_0 : i32, i32, i32
  }
}

module attributes {stable_mosaic.version = 11 : i64} {
  func.func @_mm_res_ln_kernel(%arg0: i32, %arg1: i32, %arg2: memref<16x32xbf16, #tpu.memory_space<vmem>>, %arg3: memref<32x32xbf16, #tpu.memory_space<vmem>>, %arg4: memref<1x32xf32, #tpu.memory_space<vmem>>, %arg5: memref<16x32xbf16, #tpu.memory_space<vmem>>, %arg6: memref<1x32xf32, #tpu.memory_space<vmem>>, %arg7: memref<1x32xf32, #tpu.memory_space<vmem>>, %arg8: memref<16x32xbf16, #tpu.memory_space<vmem>>, %arg9: memref<16x32xf32, #tpu.memory_space<vmem>>) attributes {dimension_semantics = [#tpu.dimension_semantics<parallel>, #tpu.dimension_semantics<arbitrary>], iteration_bounds = array<i64: 1, 1>, scalar_prefetch = 0 : i64, scratch_operands = 1 : i64, tpu.core_type = #tpu.core_type<tc>, window_params = [{transform_indices = @transform_0, window_bounds = array<i64: 16, 32>}, {transform_indices = @transform_1, window_bounds = array<i64: 32, 32>}, {pipeline_mode = #tpu.pipeline_mode<synchronous>, transform_indices = @transform_2, window_bounds = array<i64: 1, 32>}, {transform_indices = @transform_3, window_bounds = array<i64: 16, 32>}, {pipeline_mode = #tpu.pipeline_mode<synchronous>, transform_indices = @transform_4, window_bounds = array<i64: 1, 32>}, {pipeline_mode = #tpu.pipeline_mode<synchronous>, transform_indices = @transform_5, window_bounds = array<i64: 1, 32>}, {transform_indices = @transform_6, window_bounds = array<i64: 16, 32>}]} {
    %c0_i32 = arith.constant 0 : i32
    %0 = arith.cmpi eq, %arg1, %c0_i32 : i32
    %1 = arith.extui %0 : i1 to i32
    %c0_i32_0 = arith.constant 0 : i32
    %2 = arith.cmpi ne, %1, %c0_i32_0 : i32
    scf.if %2 {
      %cst_10 = arith.constant 0.000000e+00 : f32
      %12 = vector.broadcast %cst_10 : f32 to vector<16x32xf32>
      %c0_11 = arith.constant 0 : index
      %c0_12 = arith.constant 0 : index
      %13 = vector.load %arg9[%c0_11, %c0_12] : memref<16x32xf32, #tpu.memory_space<vmem>>, vector<16x32xf32>
      tpu.vector_store %arg9[%c0_11, %c0_12], %12 {strides = array<i32>} : memref<16x32xf32, #tpu.memory_space<vmem>>, vector<16x32xf32>,
    } else {
    }
    %c0 = arith.constant 0 : index
    %c0_1 = arith.constant 0 : index
    %3 = vector.load %arg9[%c0, %c0_1] : memref<16x32xf32, #tpu.memory_space<vmem>>, vector<16x32xf32>
    %c0_2 = arith.constant 0 : index
    %c0_3 = arith.constant 0 : index
    %4 = vector.load %arg2[%c0_2, %c0_3] : memref<16x32xbf16, #tpu.memory_space<vmem>>, vector<16x32xbf16>
    %c0_4 = arith.constant 0 : index
    %c0_5 = arith.constant 0 : index
    %5 = vector.load %arg3[%c0_4, %c0_5] : memref<32x32xbf16, #tpu.memory_space<vmem>>, vector<32x32xbf16>
    %cst = arith.constant dense<0.000000e+00> : vector<16x32xf32>
    %6 = tpu.matmul %4, %5, %cst {dimension_numbers = #tpu.dot_dimension_numbers<[1], [0], [0], [1], [0, 0, 1, 1], [], []>} : vector<16x32xbf16>, vector<32x32xbf16>, vector<16x32xf32> -> vector<16x32xf32>
    %7 = arith.addf %3, %6 : vector<16x32xf32>
    %c0_6 = arith.constant 0 : index
    %c0_7 = arith.constant 0 : index
    %8 = vector.load %arg9[%c0_6, %c0_7] : memref<16x32xf32, #tpu.memory_space<vmem>>, vector<16x32xf32>
    tpu.vector_store %arg9[%c0_6, %c0_7], %7 {strides = array<i32>} : memref<16x32xf32, #tpu.memory_space<vmem>>, vector<16x32xf32>,
    %c0_i32_8 = arith.constant 0 : i32
    %9 = arith.cmpi eq, %arg1, %c0_i32_8 : i32
    %10 = arith.extui %9 : i1 to i32
    %c0_i32_9 = arith.constant 0 : i32
    %11 = arith.cmpi ne, %10, %c0_i32_9 : i32
    scf.if %11 {
      %c0_10 = arith.constant 0 : index
      %c0_11 = arith.constant 0 : index
      %12 = vector.load %arg9[%c0_10, %c0_11] : memref<16x32xf32, #tpu.memory_space<vmem>>, vector<16x32xf32>
      %c0_12 = arith.constant 0 : index
      %c0_13 = arith.constant 0 : index
      %13 = vector.load %arg4[%c0_12, %c0_13] : memref<1x32xf32, #tpu.memory_space<vmem>>, vector<1x32xf32>
      %14 = vector.broadcast %13 : vector<1x32xf32> to vector<16x32xf32>
      %15 = arith.addf %12, %14 : vector<16x32xf32>
      %c0_14 = arith.constant 0 : index
      %c0_15 = arith.constant 0 : index
      %16 = vector.load %arg5[%c0_14, %c0_15] : memref<16x32xbf16, #tpu.memory_space<vmem>>, vector<16x32xbf16>
      %17 = arith.extf %16 : vector<16x32xbf16> to vector<16x32xf32>
      %18 = arith.addf %15, %17 : vector<16x32xf32>
      %cst_16 = arith.constant dense<0.000000e+00> : vector<16xf32>
      %19 = vector.multi_reduction <add>, %18, %cst_16 [1] : vector<16x32xf32> to vector<16xf32>
      %20 = vector.shape_cast %19 : vector<16xf32> to vector<16x1xf32>
      %cst_17 = arith.constant 3.200000e+01 : f32
      %21 = vector.broadcast %cst_17 : f32 to vector<16x1xf32>
      %22 = arith.divf %20, %21 : vector<16x1xf32>
      %23 = vector.broadcast %22 : vector<16x1xf32> to vector<16x32xf32>
      %24 = arith.subf %18, %23 : vector<16x32xf32>
      %25 = arith.mulf %24, %24 : vector<16x32xf32>
      %cst_18 = arith.constant dense<0.000000e+00> : vector<16xf32>
      %26 = vector.multi_reduction <add>, %25, %cst_18 [1] : vector<16x32xf32> to vector<16xf32>
      %27 = vector.shape_cast %26 : vector<16xf32> to vector<16x1xf32>
      %cst_19 = arith.constant 3.200000e+01 : f32
      %28 = vector.broadcast %cst_19 : f32 to vector<16x1xf32>
      %29 = arith.divf %27, %28 : vector<16x1xf32>
      %30 = vector.broadcast %22 : vector<16x1xf32> to vector<16x32xf32>
      %31 = arith.subf %18, %30 : vector<16x32xf32>
      %cst_20 = arith.constant 9.99999974E-6 : f32
      %32 = vector.broadcast %cst_20 : f32 to vector<16x1xf32>
      %33 = arith.addf %29, %32 : vector<16x1xf32>
      %34 = math.rsqrt %33 : vector<16x1xf32>
      %35 = vector.broadcast %34 : vector<16x1xf32> to vector<16x32xf32>
      %36 = arith.mulf %31, %35 : vector<16x32xf32>
      %c0_21 = arith.constant 0 : index
      %c0_22 = arith.constant 0 : index
      %37 = vector.load %arg6[%c0_21, %c0_22] : memref<1x32xf32, #tpu.memory_space<vmem>>, vector<1x32xf32>
      %38 = vector.broadcast %37 : vector<1x32xf32> to vector<16x32xf32>
      %39 = arith.mulf %36, %38 : vector<16x32xf32>
      %c0_23 = arith.constant 0 : index
      %c0_24 = arith.constant 0 : index
      %40 = vector.load %arg7[%c0_23, %c0_24] : memref<1x32xf32, #tpu.memory_space<vmem>>, vector<1x32xf32>
      %41 = vector.broadcast %40 : vector<1x32xf32> to vector<16x32xf32>
      %42 = arith.addf %39, %41 : vector<16x32xf32>
      %43 = arith.truncf %42 : vector<16x32xf32> to vector<16x32xbf16>
      %c0_25 = arith.constant 0 : index
      %c0_26 = arith.constant 0 : index
      %44 = vector.load %arg8[%c0_25, %c0_26] : memref<16x32xbf16, #tpu.memory_space<vmem>>, vector<16x32xbf16>
      tpu.vector_store %arg8[%c0_25, %c0_26], %43 {strides = array<i32>} : memref<16x32xbf16, #tpu.memory_space<vmem>>, vector<16x32xbf16>,
    } else {
    }
    return
  }
  func.func @transform_0(%arg0: i32, %arg1: i32) -> (i32, i32) {
    %c0_i32 = arith.constant 0 : i32
    return %arg0, %arg1 : i32, i32
  }
  func.func @transform_1(%arg0: i32, %arg1: i32) -> (i32, i32) {
    %c0_i32 = arith.constant 0 : i32
    %c0_i32_0 = arith.constant 0 : i32
    return %arg1, %c0_i32 : i32, i32
  }
  func.func @transform_2(%arg0: i32, %arg1: i32) -> (i32, i32) {
    %c0_i32 = arith.constant 0 : i32
    %c0_i32_0 = arith.constant 0 : i32
    %c0_i32_1 = arith.constant 0 : i32
    return %c0_i32, %c0_i32_0 : i32, i32
  }
  func.func @transform_3(%arg0: i32, %arg1: i32) -> (i32, i32) {
    %c0_i32 = arith.constant 0 : i32
    %c0_i32_0 = arith.constant 0 : i32
    return %arg0, %c0_i32 : i32, i32
  }
  func.func @transform_4(%arg0: i32, %arg1: i32) -> (i32, i32) {
    %c0_i32 = arith.constant 0 : i32
    %c0_i32_0 = arith.constant 0 : i32
    %c0_i32_1 = arith.constant 0 : i32
    return %c0_i32, %c0_i32_0 : i32, i32
  }
  func.func @transform_5(%arg0: i32, %arg1: i32) -> (i32, i32) {
    %c0_i32 = arith.constant 0 : i32
    %c0_i32_0 = arith.constant 0 : i32
    %c0_i32_1 = arith.constant 0 : i32
    return %c0_i32, %c0_i32_0 : i32, i32
  }
  func.func @transform_6(%arg0: i32, %arg1: i32) -> (i32, i32) {
    %c0_i32 = arith.constant 0 : i32
    %c0_i32_0 = arith.constant 0 : i32
    return %arg0, %c0_i32 : i32, i32
  }
}

module attributes {stable_mosaic.version = 11 : i64} {
  func.func @_mm_bias_act_kernel(%arg0: i32, %arg1: i32, %arg2: i32, %arg3: memref<16x32xbf16, #tpu.memory_space<vmem>>, %arg4: memref<32x64xbf16, #tpu.memory_space<vmem>>, %arg5: memref<1x64xf32, #tpu.memory_space<vmem>>, %arg6: memref<16x64xbf16, #tpu.memory_space<vmem>>, %arg7: memref<16x64xf32, #tpu.memory_space<vmem>>) attributes {dimension_semantics = [#tpu.dimension_semantics<parallel>, #tpu.dimension_semantics<parallel>, #tpu.dimension_semantics<arbitrary>], iteration_bounds = array<i64: 1, 1, 1>, scalar_prefetch = 0 : i64, scratch_operands = 1 : i64, tpu.core_type = #tpu.core_type<tc>, window_params = [{transform_indices = @transform_0, window_bounds = array<i64: 16, 32>}, {transform_indices = @transform_1, window_bounds = array<i64: 32, 64>}, {transform_indices = @transform_2, window_bounds = array<i64: 1, 64>}, {transform_indices = @transform_3, window_bounds = array<i64: 16, 64>}]} {
    %c0_i32 = arith.constant 0 : i32
    %0 = arith.cmpi eq, %arg2, %c0_i32 : i32
    %1 = arith.extui %0 : i1 to i32
    %c0_i32_0 = arith.constant 0 : i32
    %2 = arith.cmpi ne, %1, %c0_i32_0 : i32
    scf.if %2 {
      %cst_10 = arith.constant 0.000000e+00 : f32
      %12 = vector.broadcast %cst_10 : f32 to vector<16x64xf32>
      %c0_11 = arith.constant 0 : index
      %c0_12 = arith.constant 0 : index
      %13 = vector.load %arg7[%c0_11, %c0_12] : memref<16x64xf32, #tpu.memory_space<vmem>>, vector<16x64xf32>
      tpu.vector_store %arg7[%c0_11, %c0_12], %12 {strides = array<i32>} : memref<16x64xf32, #tpu.memory_space<vmem>>, vector<16x64xf32>,
    } else {
    }
    %c0 = arith.constant 0 : index
    %c0_1 = arith.constant 0 : index
    %3 = vector.load %arg7[%c0, %c0_1] : memref<16x64xf32, #tpu.memory_space<vmem>>, vector<16x64xf32>
    %c0_2 = arith.constant 0 : index
    %c0_3 = arith.constant 0 : index
    %4 = vector.load %arg3[%c0_2, %c0_3] : memref<16x32xbf16, #tpu.memory_space<vmem>>, vector<16x32xbf16>
    %c0_4 = arith.constant 0 : index
    %c0_5 = arith.constant 0 : index
    %5 = vector.load %arg4[%c0_4, %c0_5] : memref<32x64xbf16, #tpu.memory_space<vmem>>, vector<32x64xbf16>
    %cst = arith.constant dense<0.000000e+00> : vector<16x64xf32>
    %6 = tpu.matmul %4, %5, %cst {dimension_numbers = #tpu.dot_dimension_numbers<[1], [0], [0], [1], [0, 0, 1, 1], [], []>} : vector<16x32xbf16>, vector<32x64xbf16>, vector<16x64xf32> -> vector<16x64xf32>
    %7 = arith.addf %3, %6 : vector<16x64xf32>
    %c0_6 = arith.constant 0 : index
    %c0_7 = arith.constant 0 : index
    %8 = vector.load %arg7[%c0_6, %c0_7] : memref<16x64xf32, #tpu.memory_space<vmem>>, vector<16x64xf32>
    tpu.vector_store %arg7[%c0_6, %c0_7], %7 {strides = array<i32>} : memref<16x64xf32, #tpu.memory_space<vmem>>, vector<16x64xf32>,
    %c0_i32_8 = arith.constant 0 : i32
    %9 = arith.cmpi eq, %arg2, %c0_i32_8 : i32
    %10 = arith.extui %9 : i1 to i32
    %c0_i32_9 = arith.constant 0 : i32
    %11 = arith.cmpi ne, %10, %c0_i32_9 : i32
    scf.if %11 {
      %c0_10 = arith.constant 0 : index
      %c0_11 = arith.constant 0 : index
      %12 = vector.load %arg7[%c0_10, %c0_11] : memref<16x64xf32, #tpu.memory_space<vmem>>, vector<16x64xf32>
      %c0_12 = arith.constant 0 : index
      %c0_13 = arith.constant 0 : index
      %13 = vector.load %arg5[%c0_12, %c0_13] : memref<1x64xf32, #tpu.memory_space<vmem>>, vector<1x64xf32>
      %14 = vector.broadcast %13 : vector<1x64xf32> to vector<16x64xf32>
      %15 = arith.addf %12, %14 : vector<16x64xf32>
      %cst_14 = arith.constant 5.000000e-01 : f32
      %16 = vector.broadcast %cst_14 : f32 to vector<16x64xf32>
      %17 = arith.mulf %16, %15 : vector<16x64xf32>
      %cst_15 = arith.constant 0.707106769 : f32
      %18 = vector.broadcast %cst_15 : f32 to vector<16x64xf32>
      %19 = arith.mulf %15, %18 : vector<16x64xf32>
      %20 = math.absf %19 : vector<16x64xf32>
      %cst_16 = arith.constant 0.327591091 : f32
      %21 = vector.broadcast %cst_16 : f32 to vector<16x64xf32>
      %22 = arith.mulf %21, %20 : vector<16x64xf32>
      %cst_17 = arith.constant 1.000000e+00 : f32
      %23 = vector.broadcast %cst_17 : f32 to vector<16x64xf32>
      %24 = arith.addf %23, %22 : vector<16x64xf32>
      %cst_18 = arith.constant 1.000000e+00 : f32
      %25 = vector.broadcast %cst_18 : f32 to vector<16x64xf32>
      %26 = arith.divf %25, %24 : vector<16x64xf32>
      %cst_19 = arith.constant 1.06140542 : f32
      %27 = vector.broadcast %cst_19 : f32 to vector<16x64xf32>
      %28 = arith.mulf %27, %26 : vector<16x64xf32>
      %cst_20 = arith.constant -1.45315206 : f32
      %29 = vector.broadcast %cst_20 : f32 to vector<16x64xf32>
      %30 = arith.addf %28, %29 : vector<16x64xf32>
      %31 = arith.mulf %30, %26 : vector<16x64xf32>
      %cst_21 = arith.constant 1.42141378 : f32
      %32 = vector.broadcast %cst_21 : f32 to vector<16x64xf32>
      %33 = arith.addf %31, %32 : vector<16x64xf32>
      %34 = arith.mulf %33, %26 : vector<16x64xf32>
      %cst_22 = arith.constant -0.284496725 : f32
      %35 = vector.broadcast %cst_22 : f32 to vector<16x64xf32>
      %36 = arith.addf %34, %35 : vector<16x64xf32>
      %37 = arith.mulf %36, %26 : vector<16x64xf32>
      %cst_23 = arith.constant 0.254829586 : f32
      %38 = vector.broadcast %cst_23 : f32 to vector<16x64xf32>
      %39 = arith.addf %37, %38 : vector<16x64xf32>
      %40 = arith.mulf %39, %26 : vector<16x64xf32>
      %cst_24 = arith.constant 0.000000e+00 : f32
      %41 = vector.broadcast %cst_24 : f32 to vector<16x64xf32>
      %42 = arith.subf %41, %20 : vector<16x64xf32>
      %43 = arith.mulf %42, %20 : vector<16x64xf32>
      %44 = math.exp %43 : vector<16x64xf32>
      %45 = arith.mulf %40, %44 : vector<16x64xf32>
      %cst_25 = arith.constant 1.000000e+00 : f32
      %46 = vector.broadcast %cst_25 : f32 to vector<16x64xf32>
      %47 = arith.subf %46, %45 : vector<16x64xf32>
      %cst_26 = arith.constant 0.000000e+00 : f32
      %48 = vector.broadcast %cst_26 : f32 to vector<16x64xf32>
      %49 = arith.cmpf oge, %19, %48 : vector<16x64xf32>
      %cst_27 = arith.constant 0.000000e+00 : f32
      %50 = vector.broadcast %cst_27 : f32 to vector<16x64xf32>
      %51 = arith.subf %50, %47 : vector<16x64xf32>
      %52 = arith.select %49, %47, %51 : vector<16x64xi1>, vector<16x64xf32>
      %cst_28 = arith.constant 1.000000e+00 : f32
      %53 = vector.broadcast %cst_28 : f32 to vector<16x64xf32>
      %54 = arith.addf %53, %52 : vector<16x64xf32>
      %55 = arith.mulf %17, %54 : vector<16x64xf32>
      %56 = arith.truncf %55 : vector<16x64xf32> to vector<16x64xbf16>
      %c0_29 = arith.constant 0 : index
      %c0_30 = arith.constant 0 : index
      %57 = vector.load %arg6[%c0_29, %c0_30] : memref<16x64xbf16, #tpu.memory_space<vmem>>, vector<16x64xbf16>
      tpu.vector_store %arg6[%c0_29, %c0_30], %56 {strides = array<i32>} : memref<16x64xbf16, #tpu.memory_space<vmem>>, vector<16x64xbf16>,
    } else {
    }
    return
  }
  func.func @transform_0(%arg0: i32, %arg1: i32, %arg2: i32) -> (i32, i32) {
    %c0_i32 = arith.constant 0 : i32
    return %arg0, %arg2 : i32, i32
  }
  func.func @transform_1(%arg0: i32, %arg1: i32, %arg2: i32) -> (i32, i32) {
    %c0_i32 = arith.constant 0 : i32
    return %arg2, %arg1 : i32, i32
  }
  func.func @transform_2(%arg0: i32, %arg1: i32, %arg2: i32) -> (i32, i32) {
    %c0_i32 = arith.constant 0 : i32
    %c0_i32_0 = arith.constant 0 : i32
    return %c0_i32, %arg1 : i32, i32
  }
  func.func @transform_3(%arg0: i32, %arg1: i32, %arg2: i32) -> (i32, i32) {
    %c0_i32 = arith.constant 0 : i32
    return %arg0, %arg1 : i32, i32
  }
}

module attributes {stable_mosaic.version = 11 : i64} {
  func.func @_mm_res_ln_kernel(%arg0: i32, %arg1: i32, %arg2: memref<16x64xbf16, #tpu.memory_space<vmem>>, %arg3: memref<64x32xbf16, #tpu.memory_space<vmem>>, %arg4: memref<1x32xf32, #tpu.memory_space<vmem>>, %arg5: memref<16x32xbf16, #tpu.memory_space<vmem>>, %arg6: memref<1x32xf32, #tpu.memory_space<vmem>>, %arg7: memref<1x32xf32, #tpu.memory_space<vmem>>, %arg8: memref<16x32xbf16, #tpu.memory_space<vmem>>, %arg9: memref<16x32xf32, #tpu.memory_space<vmem>>) attributes {dimension_semantics = [#tpu.dimension_semantics<parallel>, #tpu.dimension_semantics<arbitrary>], iteration_bounds = array<i64: 1, 1>, scalar_prefetch = 0 : i64, scratch_operands = 1 : i64, tpu.core_type = #tpu.core_type<tc>, window_params = [{transform_indices = @transform_0, window_bounds = array<i64: 16, 64>}, {transform_indices = @transform_1, window_bounds = array<i64: 64, 32>}, {pipeline_mode = #tpu.pipeline_mode<synchronous>, transform_indices = @transform_2, window_bounds = array<i64: 1, 32>}, {transform_indices = @transform_3, window_bounds = array<i64: 16, 32>}, {pipeline_mode = #tpu.pipeline_mode<synchronous>, transform_indices = @transform_4, window_bounds = array<i64: 1, 32>}, {pipeline_mode = #tpu.pipeline_mode<synchronous>, transform_indices = @transform_5, window_bounds = array<i64: 1, 32>}, {transform_indices = @transform_6, window_bounds = array<i64: 16, 32>}]} {
    %c0_i32 = arith.constant 0 : i32
    %0 = arith.cmpi eq, %arg1, %c0_i32 : i32
    %1 = arith.extui %0 : i1 to i32
    %c0_i32_0 = arith.constant 0 : i32
    %2 = arith.cmpi ne, %1, %c0_i32_0 : i32
    scf.if %2 {
      %cst_10 = arith.constant 0.000000e+00 : f32
      %12 = vector.broadcast %cst_10 : f32 to vector<16x32xf32>
      %c0_11 = arith.constant 0 : index
      %c0_12 = arith.constant 0 : index
      %13 = vector.load %arg9[%c0_11, %c0_12] : memref<16x32xf32, #tpu.memory_space<vmem>>, vector<16x32xf32>
      tpu.vector_store %arg9[%c0_11, %c0_12], %12 {strides = array<i32>} : memref<16x32xf32, #tpu.memory_space<vmem>>, vector<16x32xf32>,
    } else {
    }
    %c0 = arith.constant 0 : index
    %c0_1 = arith.constant 0 : index
    %3 = vector.load %arg9[%c0, %c0_1] : memref<16x32xf32, #tpu.memory_space<vmem>>, vector<16x32xf32>
    %c0_2 = arith.constant 0 : index
    %c0_3 = arith.constant 0 : index
    %4 = vector.load %arg2[%c0_2, %c0_3] : memref<16x64xbf16, #tpu.memory_space<vmem>>, vector<16x64xbf16>
    %c0_4 = arith.constant 0 : index
    %c0_5 = arith.constant 0 : index
    %5 = vector.load %arg3[%c0_4, %c0_5] : memref<64x32xbf16, #tpu.memory_space<vmem>>, vector<64x32xbf16>
    %cst = arith.constant dense<0.000000e+00> : vector<16x32xf32>
    %6 = tpu.matmul %4, %5, %cst {dimension_numbers = #tpu.dot_dimension_numbers<[1], [0], [0], [1], [0, 0, 1, 1], [], []>} : vector<16x64xbf16>, vector<64x32xbf16>, vector<16x32xf32> -> vector<16x32xf32>
    %7 = arith.addf %3, %6 : vector<16x32xf32>
    %c0_6 = arith.constant 0 : index
    %c0_7 = arith.constant 0 : index
    %8 = vector.load %arg9[%c0_6, %c0_7] : memref<16x32xf32, #tpu.memory_space<vmem>>, vector<16x32xf32>
    tpu.vector_store %arg9[%c0_6, %c0_7], %7 {strides = array<i32>} : memref<16x32xf32, #tpu.memory_space<vmem>>, vector<16x32xf32>,
    %c0_i32_8 = arith.constant 0 : i32
    %9 = arith.cmpi eq, %arg1, %c0_i32_8 : i32
    %10 = arith.extui %9 : i1 to i32
    %c0_i32_9 = arith.constant 0 : i32
    %11 = arith.cmpi ne, %10, %c0_i32_9 : i32
    scf.if %11 {
      %c0_10 = arith.constant 0 : index
      %c0_11 = arith.constant 0 : index
      %12 = vector.load %arg9[%c0_10, %c0_11] : memref<16x32xf32, #tpu.memory_space<vmem>>, vector<16x32xf32>
      %c0_12 = arith.constant 0 : index
      %c0_13 = arith.constant 0 : index
      %13 = vector.load %arg4[%c0_12, %c0_13] : memref<1x32xf32, #tpu.memory_space<vmem>>, vector<1x32xf32>
      %14 = vector.broadcast %13 : vector<1x32xf32> to vector<16x32xf32>
      %15 = arith.addf %12, %14 : vector<16x32xf32>
      %c0_14 = arith.constant 0 : index
      %c0_15 = arith.constant 0 : index
      %16 = vector.load %arg5[%c0_14, %c0_15] : memref<16x32xbf16, #tpu.memory_space<vmem>>, vector<16x32xbf16>
      %17 = arith.extf %16 : vector<16x32xbf16> to vector<16x32xf32>
      %18 = arith.addf %15, %17 : vector<16x32xf32>
      %cst_16 = arith.constant dense<0.000000e+00> : vector<16xf32>
      %19 = vector.multi_reduction <add>, %18, %cst_16 [1] : vector<16x32xf32> to vector<16xf32>
      %20 = vector.shape_cast %19 : vector<16xf32> to vector<16x1xf32>
      %cst_17 = arith.constant 3.200000e+01 : f32
      %21 = vector.broadcast %cst_17 : f32 to vector<16x1xf32>
      %22 = arith.divf %20, %21 : vector<16x1xf32>
      %23 = vector.broadcast %22 : vector<16x1xf32> to vector<16x32xf32>
      %24 = arith.subf %18, %23 : vector<16x32xf32>
      %25 = arith.mulf %24, %24 : vector<16x32xf32>
      %cst_18 = arith.constant dense<0.000000e+00> : vector<16xf32>
      %26 = vector.multi_reduction <add>, %25, %cst_18 [1] : vector<16x32xf32> to vector<16xf32>
      %27 = vector.shape_cast %26 : vector<16xf32> to vector<16x1xf32>
      %cst_19 = arith.constant 3.200000e+01 : f32
      %28 = vector.broadcast %cst_19 : f32 to vector<16x1xf32>
      %29 = arith.divf %27, %28 : vector<16x1xf32>
      %30 = vector.broadcast %22 : vector<16x1xf32> to vector<16x32xf32>
      %31 = arith.subf %18, %30 : vector<16x32xf32>
      %cst_20 = arith.constant 9.99999974E-6 : f32
      %32 = vector.broadcast %cst_20 : f32 to vector<16x1xf32>
      %33 = arith.addf %29, %32 : vector<16x1xf32>
      %34 = math.rsqrt %33 : vector<16x1xf32>
      %35 = vector.broadcast %34 : vector<16x1xf32> to vector<16x32xf32>
      %36 = arith.mulf %31, %35 : vector<16x32xf32>
      %c0_21 = arith.constant 0 : index
      %c0_22 = arith.constant 0 : index
      %37 = vector.load %arg6[%c0_21, %c0_22] : memref<1x32xf32, #tpu.memory_space<vmem>>, vector<1x32xf32>
      %38 = vector.broadcast %37 : vector<1x32xf32> to vector<16x32xf32>
      %39 = arith.mulf %36, %38 : vector<16x32xf32>
      %c0_23 = arith.constant 0 : index
      %c0_24 = arith.constant 0 : index
      %40 = vector.load %arg7[%c0_23, %c0_24] : memref<1x32xf32, #tpu.memory_space<vmem>>, vector<1x32xf32>
      %41 = vector.broadcast %40 : vector<1x32xf32> to vector<16x32xf32>
      %42 = arith.addf %39, %41 : vector<16x32xf32>
      %43 = arith.truncf %42 : vector<16x32xf32> to vector<16x32xbf16>
      %c0_25 = arith.constant 0 : index
      %c0_26 = arith.constant 0 : index
      %44 = vector.load %arg8[%c0_25, %c0_26] : memref<16x32xbf16, #tpu.memory_space<vmem>>, vector<16x32xbf16>
      tpu.vector_store %arg8[%c0_25, %c0_26], %43 {strides = array<i32>} : memref<16x32xbf16, #tpu.memory_space<vmem>>, vector<16x32xbf16>,
    } else {
    }
    return
  }
  func.func @transform_0(%arg0: i32, %arg1: i32) -> (i32, i32) {
    %c0_i32 = arith.constant 0 : i32
    return %arg0, %arg1 : i32, i32
  }
  func.func @transform_1(%arg0: i32, %arg1: i32) -> (i32, i32) {
    %c0_i32 = arith.constant 0 : i32
    %c0_i32_0 = arith.constant 0 : i32
    return %arg1, %c0_i32 : i32, i32
  }
  func.func @transform_2(%arg0: i32, %arg1: i32) -> (i32, i32) {
    %c0_i32 = arith.constant 0 : i32
    %c0_i32_0 = arith.constant 0 : i32
    %c0_i32_1 = arith.constant 0 : i32
    return %c0_i32, %c0_i32_0 : i32, i32
  }
  func.func @transform_3(%arg0: i32, %arg1: i32) -> (i32, i32) {
    %c0_i32 = arith.constant 0 : i32
    %c0_i32_0 = arith.constant 0 : i32
    return %arg0, %c0_i32 : i32, i32
  }
  func.func @transform_4(%arg0: i32, %arg1: i32) -> (i32, i32) {
    %c0_i32 = arith.constant 0 : i32
    %c0_i32_0 = arith.constant 0 : i32
    %c0_i32_1 = arith.constant 0 : i32
    return %c0_i32, %c0_i32_0 : i32, i32
  }
  func.func @transform_5(%arg0: i32, %arg1: i32) -> (i32, i32) {
    %c0_i32 = arith.constant 0 : i32
    %c0_i32_0 = arith.constant 0 : i32
    %c0_i32_1 = arith.constant 0 : i32
    return %c0_i32, %c0_i32_0 : i32, i32
  }
  func.func @transform_6(%arg0: i32, %arg1: i32) -> (i32, i32) {
    %c0_i32 = arith.constant 0 : i32
    %c0_i32_0 = arith.constant 0 : i32
    return %arg0, %c0_i32 : i32, i32
  }
}

module attributes {stable_mosaic.version = 11 : i64} {
  func.func @_mm_bias_act_kernel(%arg0: i32, %arg1: i32, %arg2: i32, %arg3: memref<8x32xbf16, #tpu.memory_space<vmem>>, %arg4: memref<32x32xbf16, #tpu.memory_space<vmem>>, %arg5: memref<1x32xf32, #tpu.memory_space<vmem>>, %arg6: memref<8x32xbf16, #tpu.memory_space<vmem>>, %arg7: memref<8x32xf32, #tpu.memory_space<vmem>>) attributes {dimension_semantics = [#tpu.dimension_semantics<parallel>, #tpu.dimension_semantics<parallel>, #tpu.dimension_semantics<arbitrary>], iteration_bounds = array<i64: 1, 1, 1>, scalar_prefetch = 0 : i64, scratch_operands = 1 : i64, tpu.core_type = #tpu.core_type<tc>, window_params = [{transform_indices = @transform_0, window_bounds = array<i64: 8, 32>}, {transform_indices = @transform_1, window_bounds = array<i64: 32, 32>}, {transform_indices = @transform_2, window_bounds = array<i64: 1, 32>}, {transform_indices = @transform_3, window_bounds = array<i64: 8, 32>}]} {
    %c0_i32 = arith.constant 0 : i32
    %0 = arith.cmpi eq, %arg2, %c0_i32 : i32
    %1 = arith.extui %0 : i1 to i32
    %c0_i32_0 = arith.constant 0 : i32
    %2 = arith.cmpi ne, %1, %c0_i32_0 : i32
    scf.if %2 {
      %cst_10 = arith.constant 0.000000e+00 : f32
      %12 = vector.broadcast %cst_10 : f32 to vector<8x32xf32>
      %c0_11 = arith.constant 0 : index
      %c0_12 = arith.constant 0 : index
      %13 = vector.load %arg7[%c0_11, %c0_12] : memref<8x32xf32, #tpu.memory_space<vmem>>, vector<8x32xf32>
      tpu.vector_store %arg7[%c0_11, %c0_12], %12 {strides = array<i32>} : memref<8x32xf32, #tpu.memory_space<vmem>>, vector<8x32xf32>,
    } else {
    }
    %c0 = arith.constant 0 : index
    %c0_1 = arith.constant 0 : index
    %3 = vector.load %arg7[%c0, %c0_1] : memref<8x32xf32, #tpu.memory_space<vmem>>, vector<8x32xf32>
    %c0_2 = arith.constant 0 : index
    %c0_3 = arith.constant 0 : index
    %4 = vector.load %arg3[%c0_2, %c0_3] : memref<8x32xbf16, #tpu.memory_space<vmem>>, vector<8x32xbf16>
    %c0_4 = arith.constant 0 : index
    %c0_5 = arith.constant 0 : index
    %5 = vector.load %arg4[%c0_4, %c0_5] : memref<32x32xbf16, #tpu.memory_space<vmem>>, vector<32x32xbf16>
    %cst = arith.constant dense<0.000000e+00> : vector<8x32xf32>
    %6 = tpu.matmul %4, %5, %cst {dimension_numbers = #tpu.dot_dimension_numbers<[1], [0], [0], [1], [0, 0, 1, 1], [], []>} : vector<8x32xbf16>, vector<32x32xbf16>, vector<8x32xf32> -> vector<8x32xf32>
    %7 = arith.addf %3, %6 : vector<8x32xf32>
    %c0_6 = arith.constant 0 : index
    %c0_7 = arith.constant 0 : index
    %8 = vector.load %arg7[%c0_6, %c0_7] : memref<8x32xf32, #tpu.memory_space<vmem>>, vector<8x32xf32>
    tpu.vector_store %arg7[%c0_6, %c0_7], %7 {strides = array<i32>} : memref<8x32xf32, #tpu.memory_space<vmem>>, vector<8x32xf32>,
    %c0_i32_8 = arith.constant 0 : i32
    %9 = arith.cmpi eq, %arg2, %c0_i32_8 : i32
    %10 = arith.extui %9 : i1 to i32
    %c0_i32_9 = arith.constant 0 : i32
    %11 = arith.cmpi ne, %10, %c0_i32_9 : i32
    scf.if %11 {
      %c0_10 = arith.constant 0 : index
      %c0_11 = arith.constant 0 : index
      %12 = vector.load %arg7[%c0_10, %c0_11] : memref<8x32xf32, #tpu.memory_space<vmem>>, vector<8x32xf32>
      %c0_12 = arith.constant 0 : index
      %c0_13 = arith.constant 0 : index
      %13 = vector.load %arg5[%c0_12, %c0_13] : memref<1x32xf32, #tpu.memory_space<vmem>>, vector<1x32xf32>
      %14 = vector.broadcast %13 : vector<1x32xf32> to vector<8x32xf32>
      %15 = arith.addf %12, %14 : vector<8x32xf32>
      %cst_14 = arith.constant 0.000000e+00 : f32
      %16 = vector.broadcast %cst_14 : f32 to vector<8x32xf32>
      %17 = arith.maximumf %15, %16 : vector<8x32xf32>
      %18 = arith.truncf %17 : vector<8x32xf32> to vector<8x32xbf16>
      %c0_15 = arith.constant 0 : index
      %c0_16 = arith.constant 0 : index
      %19 = vector.load %arg6[%c0_15, %c0_16] : memref<8x32xbf16, #tpu.memory_space<vmem>>, vector<8x32xbf16>
      tpu.vector_store %arg6[%c0_15, %c0_16], %18 {strides = array<i32>} : memref<8x32xbf16, #tpu.memory_space<vmem>>, vector<8x32xbf16>,
    } else {
    }
    return
  }
  func.func @transform_0(%arg0: i32, %arg1: i32, %arg2: i32) -> (i32, i32) {
    %c0_i32 = arith.constant 0 : i32
    return %arg0, %arg2 : i32, i32
  }
  func.func @transform_1(%arg0: i32, %arg1: i32, %arg2: i32) -> (i32, i32) {
    %c0_i32 = arith.constant 0 : i32
    return %arg2, %arg1 : i32, i32
  }
  func.func @transform_2(%arg0: i32, %arg1: i32, %arg2: i32) -> (i32, i32) {
    %c0_i32 = arith.constant 0 : i32
    %c0_i32_0 = arith.constant 0 : i32
    return %c0_i32, %arg1 : i32, i32
  }
  func.func @transform_3(%arg0: i32, %arg1: i32, %arg2: i32) -> (i32, i32) {
    %c0_i32 = arith.constant 0 : i32
    return %arg0, %arg1 : i32, i32
  }
}

module attributes {stable_mosaic.version = 11 : i64} {
  func.func @_mm_bias_act_kernel(%arg0: i32, %arg1: i32, %arg2: i32, %arg3: memref<8x32xbf16, #tpu.memory_space<vmem>>, %arg4: memref<32x3xbf16, #tpu.memory_space<vmem>>, %arg5: memref<1x3xf32, #tpu.memory_space<vmem>>, %arg6: memref<8x3xf32, #tpu.memory_space<vmem>>, %arg7: memref<8x3xf32, #tpu.memory_space<vmem>>) attributes {dimension_semantics = [#tpu.dimension_semantics<parallel>, #tpu.dimension_semantics<parallel>, #tpu.dimension_semantics<arbitrary>], iteration_bounds = array<i64: 1, 1, 1>, scalar_prefetch = 0 : i64, scratch_operands = 1 : i64, tpu.core_type = #tpu.core_type<tc>, window_params = [{transform_indices = @transform_0, window_bounds = array<i64: 8, 32>}, {transform_indices = @transform_1, window_bounds = array<i64: 32, 3>}, {transform_indices = @transform_2, window_bounds = array<i64: 1, 3>}, {transform_indices = @transform_3, window_bounds = array<i64: 8, 3>}]} {
    %c0_i32 = arith.constant 0 : i32
    %0 = arith.cmpi eq, %arg2, %c0_i32 : i32
    %1 = arith.extui %0 : i1 to i32
    %c0_i32_0 = arith.constant 0 : i32
    %2 = arith.cmpi ne, %1, %c0_i32_0 : i32
    scf.if %2 {
      %cst_10 = arith.constant 0.000000e+00 : f32
      %12 = vector.broadcast %cst_10 : f32 to vector<8x3xf32>
      %c0_11 = arith.constant 0 : index
      %c0_12 = arith.constant 0 : index
      %13 = vector.load %arg7[%c0_11, %c0_12] : memref<8x3xf32, #tpu.memory_space<vmem>>, vector<8x3xf32>
      tpu.vector_store %arg7[%c0_11, %c0_12], %12 {strides = array<i32>} : memref<8x3xf32, #tpu.memory_space<vmem>>, vector<8x3xf32>,
    } else {
    }
    %c0 = arith.constant 0 : index
    %c0_1 = arith.constant 0 : index
    %3 = vector.load %arg7[%c0, %c0_1] : memref<8x3xf32, #tpu.memory_space<vmem>>, vector<8x3xf32>
    %c0_2 = arith.constant 0 : index
    %c0_3 = arith.constant 0 : index
    %4 = vector.load %arg3[%c0_2, %c0_3] : memref<8x32xbf16, #tpu.memory_space<vmem>>, vector<8x32xbf16>
    %c0_4 = arith.constant 0 : index
    %c0_5 = arith.constant 0 : index
    %5 = vector.load %arg4[%c0_4, %c0_5] : memref<32x3xbf16, #tpu.memory_space<vmem>>, vector<32x3xbf16>
    %cst = arith.constant dense<0.000000e+00> : vector<8x3xf32>
    %6 = tpu.matmul %4, %5, %cst {dimension_numbers = #tpu.dot_dimension_numbers<[1], [0], [0], [1], [0, 0, 1, 1], [], []>} : vector<8x32xbf16>, vector<32x3xbf16>, vector<8x3xf32> -> vector<8x3xf32>
    %7 = arith.addf %3, %6 : vector<8x3xf32>
    %c0_6 = arith.constant 0 : index
    %c0_7 = arith.constant 0 : index
    %8 = vector.load %arg7[%c0_6, %c0_7] : memref<8x3xf32, #tpu.memory_space<vmem>>, vector<8x3xf32>
    tpu.vector_store %arg7[%c0_6, %c0_7], %7 {strides = array<i32>} : memref<8x3xf32, #tpu.memory_space<vmem>>, vector<8x3xf32>,
    %c0_i32_8 = arith.constant 0 : i32
    %9 = arith.cmpi eq, %arg2, %c0_i32_8 : i32
    %10 = arith.extui %9 : i1 to i32
    %c0_i32_9 = arith.constant 0 : i32
    %11 = arith.cmpi ne, %10, %c0_i32_9 : i32
    scf.if %11 {
      %c0_10 = arith.constant 0 : index
      %c0_11 = arith.constant 0 : index
      %12 = vector.load %arg7[%c0_10, %c0_11] : memref<8x3xf32, #tpu.memory_space<vmem>>, vector<8x3xf32>
      %c0_12 = arith.constant 0 : index
      %c0_13 = arith.constant 0 : index
      %13 = vector.load %arg5[%c0_12, %c0_13] : memref<1x3xf32, #tpu.memory_space<vmem>>, vector<1x3xf32>
      %14 = vector.broadcast %13 : vector<1x3xf32> to vector<8x3xf32>
      %15 = arith.addf %12, %14 : vector<8x3xf32>
      %c0_14 = arith.constant 0 : index
      %c0_15 = arith.constant 0 : index
      %16 = vector.load %arg6[%c0_14, %c0_15] : memref<8x3xf32, #tpu.memory_space<vmem>>, vector<8x3xf32>
      tpu.vector_store %arg6[%c0_14, %c0_15], %15 {strides = array<i32>} : memref<8x3xf32, #tpu.memory_space<vmem>>, vector<8x3xf32>,
    } else {
    }
    return
  }
  func.func @transform_0(%arg0: i32, %arg1: i32, %arg2: i32) -> (i32, i32) {
    %c0_i32 = arith.constant 0 : i32
    return %arg0, %arg2 : i32, i32
  }
  func.func @transform_1(%arg0: i32, %arg1: i32, %arg2: i32) -> (i32, i32) {
    %c0_i32 = arith.constant 0 : i32
    return %arg2, %arg1 : i32, i32
  }
  func.func @transform_2(%arg0: i32, %arg1: i32, %arg2: i32) -> (i32, i32) {
    %c0_i32 = arith.constant 0 : i32
    %c0_i32_0 = arith.constant 0 : i32
    return %c0_i32, %arg1 : i32, i32
  }
  func.func @transform_3(%arg0: i32, %arg1: i32, %arg2: i32) -> (i32, i32) {
    %c0_i32 = arith.constant 0 : i32
    return %arg0, %arg1 : i32, i32
  }
}

</mosaic_0001>

<llo_original>
// kernel: roberta_classifier_forward.13
$region0: #{roberta_classifier_forward.13}
  #allocation0 [shape = 'u32[]', space=smem, size = 0x4, offset = 0x4, fixed_abs, tag = 'smem constant byte address 0x4 - core index']
  #allocation1 [shape = 'u32[144,128]{1,0:T(1,128)}', space=vmem, size = 0x12000, scoped, tag = 'internal scratch']
  %s0 = inlined_call_operand.vmem [shape: bf16[16,32], index: 0, kind: input, shape index: {}]
  %s1 = inlined_call_operand.vmem [shape: bf16[16,32], index: 1, kind: input, shape index: {}]
  %s2 = inlined_call_operand.vmem [shape: f32[1,32], index: 2, kind: input, shape index: {}]
  %s3 = inlined_call_operand.vmem [shape: f32[1,32], index: 3, kind: input, shape index: {}]
  %s4 = inlined_call_operand.vmem [shape: bf16[16,32], index: 4, kind: output, shape index: {}]
  %s5 = sld [smem:[#allocation0]]
  $region26: #{roberta_classifier_forward.13} parent=0
    _
  %s7 = ssub.s32 1, %s5
  %s8 = scalar_select 0, %s7, %s5
  // Predicated region
  $region2: #{roberta_classifier_forward.13} parent=0 // pred_check
    _
  $region3: #{roberta_classifier_forward.13} parent=0 // pred_check_branch
    %10 = sbr.rel (0) target = $region5
  $region4: #{roberta_classifier_forward.13} parent=0 // pred_region
    _
  $region5: #{roberta_classifier_forward.13} parent=0 // pred_fallthru
    _
  // Predicated region
  $region6: #{roberta_classifier_forward.13} parent=0 // pred_check
    _
  $region7: #{roberta_classifier_forward.13} parent=0 // pred_check_branch
    %12 = sbr.rel (0) target = $region9
  $region8: #{roberta_classifier_forward.13} parent=0 // pred_region
    _
  $region9: #{roberta_classifier_forward.13} parent=0 // pred_fallthru
    _
  // Predicated region
  $region10: #{roberta_classifier_forward.13} parent=0 // pred_check
    _
  $region11: #{roberta_classifier_forward.13} parent=0 // pred_check_branch
    %14 = sbr.rel (0) target = $region13
  $region12: #{roberta_classifier_forward.13} parent=0 // pred_region
    _
  $region13: #{roberta_classifier_forward.13} parent=0 // pred_fallthru
    _
  // Predicated region
  $region14: #{roberta_classifier_forward.13} parent=0 // pred_check
    _
  $region15: #{roberta_classifier_forward.13} parent=0 // pred_check_branch
    %16 = sbr.rel (0) target = $region17
  $region16: #{roberta_classifier_forward.13} parent=0 // pred_region
    _
  $region17: #{roberta_classifier_forward.13} parent=0 // pred_fallthru
    _
  %v17 = vld [vmem:[%s0] sm:$0xf]
  %v18 = vld [vmem:[%s0 + $0x4] sm:$0xf]
  %v19 = vunpack.c.l.bf16 %v17
  %v20 = vunpack.c.l.bf16 %v18
  %v21 = vld [vmem:[%s1] sm:$0xf]
  %v22 = vld [vmem:[%s1 + $0x4] sm:$0xf]
  %v23 = vunpack.c.l.bf16 %v21
  %v24 = vunpack.c.l.bf16 %v22
  %v25 = vadd.f32 %v19, %v23
  %v26 = vadd.f32 %v20, %v24
  %vm27 = vcmask 261120
  %v28 = vsel %vm27, %v25, 0.0
  %29 = vadd.xlane.f32.xlu0 %v28
  %v30 = vpop.xlane.xlu0 %29
  %v31 = vsel %vm27, %v26, 0.0
  %32 = vadd.xlane.f32.xlu0 %v31
  %v33 = vpop.xlane.xlu0 %32
  %v34 = vrcp.pop 32.0
  %v35 = vmul.f32 %v30, %v34
  %v36 = vmul.f32 %v33, %v34
  %v37 = vsub.f32 %v25, %v35
  %v38 = vsub.f32 %v26, %v36
  %v39 = vmul.f32 %v37, %v37
  %v40 = vmul.f32 %v38, %v38
  %v41 = vsel %vm27, %v39, 0.0
  %42 = vadd.xlane.f32.xlu0 %v41
  %v43 = vpop.xlane.xlu0 %42
  %v44 = vsel %vm27, %v40, 0.0
  %45 = vadd.xlane.f32.xlu0 %v44
  %v46 = vpop.xlane.xlu0 %45
  %v47 = vmul.f32 %v43, %v34
  %v48 = vmul.f32 %v46, %v34
  %v49 = vadd.f32 %v47, 1e-05
  %v50 = vadd.f32 %v48, 1e-05
  %v51 = vrsqrt.pop %v49
  %v52 = vrsqrt.pop %v50
  %v53 = vmul.f32 %v37, %v51
  %v54 = vmul.f32 %v38, %v52
  %v55 = vld [vmem:[%s2] sm:$0x1]
  %v57 = vlaneseq
  %v58 = vshrl.u32 %v57, 7
  %v59 = vsub.s32 0, %v58
  %v60 = vrot.slane %v55, %v59
  %v62 = vmul.f32 %v53, %v60
  %v63 = vmul.f32 %v54, %v60
  %v64 = vld [vmem:[%s3] sm:$0x1]
  %v66 = vlaneseq
  %v67 = vshrl.u32 %v66, 7
  %v68 = vsub.s32 0, %v67
  %v69 = vrot.slane %v64, %v68
  %v71 = vadd.f32 %v62, %v69
  %v72 = vadd.f32 %v63, %v69
  %v73 = vpack.c.bf16 %v72, %v71
  %v75 = vunpack.c.l.b16 %v73
  %v76 = vunpack.c.h.b16 %v73
  %v77 = vpack.c.b16 %v75, %v75
  %v78 = vpack.c.b16 %v76, %v76
  %vm81 = vcmask 257024
  %82 = vst.msk [vmem:[%s4] sm:$0xf] %vm81, %v77
  %83 = vst.msk [vmem:[%s4 + $0x4] sm:$0xf] %vm81, %v78
  // Predicated region
  $region18: #{roberta_classifier_forward.13} parent=0 // pred_check
    _
  $region19: #{roberta_classifier_forward.13} parent=0 // pred_check_branch
    %85 = sbr.rel (0) target = $region21
  $region20: #{roberta_classifier_forward.13} parent=0 // pred_region
    _
  $region21: #{roberta_classifier_forward.13} parent=0 // pred_fallthru
    _
  // Predicated region
  $region22: #{roberta_classifier_forward.13} parent=0 // pred_check
    _
  $region23: #{roberta_classifier_forward.13} parent=0 // pred_check_branch
    %87 = sbr.rel (0) target = $region25
  $region24: #{roberta_classifier_forward.13} parent=0 // pred_region
    _
  $region25: #{roberta_classifier_forward.13} parent=0 // pred_fallthru
    _

// kernel: roberta_classifier_forward.14
$region0: #{roberta_classifier_forward.14}
  #allocation0 [shape = 'u32[]', space=smem, size = 0x4, offset = 0x4, fixed_abs, tag = 'smem constant byte address 0x4 - core index']
  #allocation1 [shape = 'u32[144,128]{1,0:T(1,128)}', space=vmem, size = 0x12000, scoped, tag = 'internal scratch']
  #allocation2 [shape = 'f32[16,96]{1,0:T(8,128)}', space=vmem, size = 0x2000, scoped, tag = 'scratch operand']
  %s0 = inlined_call_operand.vmem [shape: bf16[16,32], index: 0, kind: input, shape index: {}]
  %s1 = inlined_call_operand.vmem [shape: bf16[32,96], index: 1, kind: input, shape index: {}]
  %s2 = inlined_call_operand.vmem [shape: f32[1,96], index: 2, kind: input, shape index: {}]
  %s3 = inlined_call_operand.vmem [shape: bf16[16,96], index: 3, kind: output, shape index: {}]
  %s4 = sld [smem:[#allocation0]]
  $region30: #{roberta_classifier_forward.14} parent=0
    _
  %s6 = ssub.s32 1, %s4
  %s7 = scalar_select 0, %s6, %s4
  // Predicated region
  $region2: #{roberta_classifier_forward.14} parent=0 // pred_check
    _
  $region3: #{roberta_classifier_forward.14} parent=0 // pred_check_branch
    %9 = sbr.rel (0) target = $region5
  $region4: #{roberta_classifier_forward.14} parent=0 // pred_region
    _
  $region5: #{roberta_classifier_forward.14} parent=0 // pred_fallthru
    _
  // Predicated region
  $region6: #{roberta_classifier_forward.14} parent=0 // pred_check
    _
  $region7: #{roberta_classifier_forward.14} parent=0 // pred_check_branch
    %11 = sbr.rel (0) target = $region9
  $region8: #{roberta_classifier_forward.14} parent=0 // pred_region
    _
  $region9: #{roberta_classifier_forward.14} parent=0 // pred_fallthru
    _
  // Predicated region
  $region10: #{roberta_classifier_forward.14} parent=0 // pred_check
    _
  $region11: #{roberta_classifier_forward.14} parent=0 // pred_check_branch
    %13 = sbr.rel (0) target = $region13
  $region12: #{roberta_classifier_forward.14} parent=0 // pred_region
    _
  $region13: #{roberta_classifier_forward.14} parent=0 // pred_fallthru
    _
  %p15 = scmp.eq.s32.totalorder 0, 0
  // Predicated region
  $region14: #{roberta_classifier_forward.14} parent=0 // pred_check
    %p16 = pneg %p15
  $region15: #{roberta_classifier_forward.14} parent=0 // pred_check_branch
    %18 = sbr.rel (%p16) target = $region17
  $region16: #{roberta_classifier_forward.14} parent=0 // pred_region
    %vm19 = vcmask 785408
    %20 = vst.msk [vmem:[#allocation2] sm:$0xff] %vm19, 0.0
    %21 = vst.msk [vmem:[#allocation2 + $0x8] sm:$0xff] %vm19, 0.0
  $region17: #{roberta_classifier_forward.14} parent=0 // pred_fallthru
    _
  %v22 = vld [vmem:[#allocation2] sm:$0xff]
  %v23 = vld [vmem:[#allocation2 + $0x8] sm:$0xff]
  %v24 = vld [vmem:[%s0] sm:$0xf]
  %v25 = vld [vmem:[%s0 + $0x4] sm:$0xf]
  %v26 = vld [vmem:[%s1] sm:$0xf]
  %v27 = vld [vmem:[%s1 + $0x4] sm:$0xf]
  %v28 = vld [vmem:[%s1 + $0x8] sm:$0xf]
  %v29 = vld [vmem:[%s1 + $0xc] sm:$0xf]
  %v32 = vunpack.c.l.b16 %v24
  %v33 = vunpack.c.l.b16 %v25
  %v34 = vpack.c.b16 %v33, %v32
  %v39 = vunpack.c.l.b16 %v26
  %v40 = vunpack.c.l.b16 %v27
  %v41 = vunpack.c.l.b16 %v28
  %v42 = vunpack.c.l.b16 %v29
  %v43 = vpack.c.b16 %v40, %v39
  %v44 = vpack.c.b16 %v42, %v41
  %vm47 = vcmask 261120
  %v49 = vsel %vm47, %v34, 0
  %51 = vmatprep.subr.bf16.mxu0 0
  %52 = vmatpush1.bf16.msra.mxu0 0
  %53 = vmatprep.subr.bf16.mxu0 0
  %54 = vmatpush1.bf16.msra.mxu0 0
  %55 = vmatprep.subr.bf16.mxu0 0
  %56 = vmatpush1.bf16.msra.mxu0 0
  %57 = vmatprep.subr.bf16.mxu0 0
  %58 = vmatpush1.bf16.msra.mxu0 0
  %59 = vmatprep.subr.bf16.mxu0 0
  %60 = vmatpush1.bf16.msra.mxu0 0
  %61 = vmatprep.subr.bf16.mxu0 0
  %62 = vmatpush1.bf16.msra.mxu0 0
  %63 = vmatprep.subr.bf16.mxu0 0
  %64 = vmatpush1.bf16.msra.mxu0 %v44
  %65 = vmatprep.subr.bf16.mxu0 0
  %66 = vmatpush1.bf16.msra.mxu0 %v43
  %67 = vmatprep.subr.bf16.mxu0 0
  %68 = vmatpush2.bf16.msra.mxu0 0
  %69 = vmatprep.subr.bf16.mxu0 0
  %70 = vmatpush2.bf16.msra.mxu0 0
  %71 = vmatprep.subr.bf16.mxu0 0
  %72 = vmatpush2.bf16.msra.mxu0 0
  %73 = vmatprep.subr.bf16.mxu0 0
  %74 = vmatpush2.bf16.msra.mxu0 0
  %75 = vmatprep.subr.bf16.mxu0 0
  %76 = vmatpush2.bf16.msra.mxu0 0
  %77 = vmatprep.subr.bf16.mxu0 0
  %78 = vmatpush2.bf16.msra.mxu0 0
  %79 = vmatprep.subr.bf16.mxu0 0
  %80 = vmatpush2.bf16.msra.mxu0 0
  %81 = vmatprep.subr.bf16.mxu0 0
  %82 = vmatpush2.bf16.msra.mxu0 0
  %83 = vmatprep.mubr.bf16.mxu0 0
  %84 = vmatmul.mubr.bf16.gmra.mxu0 %v49
  %v85 = vpop.f32.mrf.mxu0
  %v86 = vadd.f32 0.0, %v85
  %v87 = vpop.f32.mrf.mxu0
  %v88 = vpop.f32.mrf.mxu0
  %v89 = vadd.f32 0.0, %v88
  %v90 = vpop.f32.mrf.mxu0
  %91 = vdwg.mxu0
  %v92 = vadd.f32 %v22, %v86
  %v93 = vadd.f32 %v23, %v89
  %vm94 = vcmask 785408
  %95 = vst.msk [vmem:[#allocation2] sm:$0xff] %vm94, %v92
  %96 = vst.msk [vmem:[#allocation2 + $0x8] sm:$0xff] %vm94, %v93
  // Predicated region
  $region18: #{roberta_classifier_forward.14} parent=0 // pred_check
    %p97 = pneg %p15
  $region19: #{roberta_classifier_forward.14} parent=0 // pred_check_branch
    %99 = sbr.rel (%p97) target = $region21
  $region20: #{roberta_classifier_forward.14} parent=0 // pred_region
    %v100 = vld [vmem:[#allocation2] sm:$0xff]
    %v101 = vld [vmem:[#allocation2 + $0x8] sm:$0xff]
    %v102 = vld [vmem:[%s2] sm:$0x1]
    %v104 = vlaneseq
    %v105 = vshrl.u32 %v104, 7
    %v106 = vsub.s32 0, %v105
    %v107 = vrot.slane %v102, %v106
    %v109 = vadd.f32 %v100, %v107
    %v110 = vadd.f32 %v101, %v107
    %v111 = vpack.c.bf16 %v110, %v109
    %v113 = vunpack.c.l.b16 %v111
    %v114 = vunpack.c.h.b16 %v111
    %v115 = vpack.c.b16 %v113, %v113
    %v116 = vpack.c.b16 %v114, %v114
    %vm119 = vcmask 781312
    %120 = vst.msk [vmem:[%s3] sm:$0xf] %vm119, %v115
    %121 = vst.msk [vmem:[%s3 + $0x4] sm:$0xf] %vm119, %v116
  $region21: #{roberta_classifier_forward.14} parent=0 // pred_fallthru
    _
  // Predicated region
  $region22: #{roberta_classifier_forward.14} parent=0 // pred_check
    _
  $region23: #{roberta_classifier_forward.14} parent=0 // pred_check_branch
    %123 = sbr.rel (0) target = $region25
  $region24: #{roberta_classifier_forward.14} parent=0 // pred_region
    _
  $region25: #{roberta_classifier_forward.14} parent=0 // pred_fallthru
    _
  // Predicated region
  $region26: #{roberta_classifier_forward.14} parent=0 // pred_check
    _
  $region27: #{roberta_classifier_forward.14} parent=0 // pred_check_branch
    %125 = sbr.rel (0) target = $region29
  $region28: #{roberta_classifier_forward.14} parent=0 // pred_region
    _
  $region29: #{roberta_classifier_forward.14} parent=0 // pred_fallthru
    _

// kernel: roberta_classifier_forward.16
$region0: #{roberta_classifier_forward.16}
  #allocation0 [shape = 'u32[]', space=smem, size = 0x4, offset = 0x4, fixed_abs, tag = 'smem constant byte address 0x4 - core index']
  #allocation1 [shape = 'u32[144,128]{1,0:T(1,128)}', space=vmem, size = 0x12000, scoped, tag = 'internal scratch']
  #allocation2 [shape = 'f32[16,32]{1,0:T(8,128)}', space=vmem, size = 0x2000, scoped, tag = 'scratch operand']
  %s0 = inlined_call_operand.vmem [shape: bf16[16,32], index: 0, kind: input, shape index: {}]
  %s1 = inlined_call_operand.vmem [shape: bf16[32,32], index: 1, kind: input, shape index: {}]
  %s2 = inlined_call_operand.vmem [shape: f32[1,32], index: 2, kind: input, shape index: {}]
  %s3 = inlined_call_operand.vmem [shape: bf16[16,32], index: 3, kind: input, shape index: {}]
  %s4 = inlined_call_operand.vmem [shape: f32[1,32], index: 4, kind: input, shape index: {}]
  %s5 = inlined_call_operand.vmem [shape: f32[1,32], index: 5, kind: input, shape index: {}]
  %s6 = inlined_call_operand.vmem [shape: bf16[16,32], index: 6, kind: output, shape index: {}]
  %s7 = sld [smem:[#allocation0]]
  $region42: #{roberta_classifier_forward.16} parent=0
    _
  %s9 = ssub.s32 1, %s7
  %s10 = scalar_select 0, %s9, %s7
  // Predicated region
  $region2: #{roberta_classifier_forward.16} parent=0 // pred_check
    _
  $region3: #{roberta_classifier_forward.16} parent=0 // pred_check_branch
    %12 = sbr.rel (0) target = $region5
  $region4: #{roberta_classifier_forward.16} parent=0 // pred_region
    _
  $region5: #{roberta_classifier_forward.16} parent=0 // pred_fallthru
    _
  // Predicated region
  $region6: #{roberta_classifier_forward.16} parent=0 // pred_check
    _
  $region7: #{roberta_classifier_forward.16} parent=0 // pred_check_branch
    %14 = sbr.rel (0) target = $region9
  $region8: #{roberta_classifier_forward.16} parent=0 // pred_region
    _
  $region9: #{roberta_classifier_forward.16} parent=0 // pred_fallthru
    _
  // Predicated region
  $region10: #{roberta_classifier_forward.16} parent=0 // pred_check
    _
  $region11: #{roberta_classifier_forward.16} parent=0 // pred_check_branch
    %16 = sbr.rel (0) target = $region13
  $region12: #{roberta_classifier_forward.16} parent=0 // pred_region
    _
  $region13: #{roberta_classifier_forward.16} parent=0 // pred_fallthru
    _
  // Predicated region
  $region14: #{roberta_classifier_forward.16} parent=0 // pred_check
    _
  $region15: #{roberta_classifier_forward.16} parent=0 // pred_check_branch
    %18 = sbr.rel (0) target = $region17
  $region16: #{roberta_classifier_forward.16} parent=0 // pred_region
    _
  $region17: #{roberta_classifier_forward.16} parent=0 // pred_fallthru
    _
  // Predicated region
  $region18: #{roberta_classifier_forward.16} parent=0 // pred_check
    _
  $region19: #{roberta_classifier_forward.16} parent=0 // pred_check_branch
    %20 = sbr.rel (0) target = $region21
  $region20: #{roberta_classifier_forward.16} parent=0 // pred_region
    _
  $region21: #{roberta_classifier_forward.16} parent=0 // pred_fallthru
    _
  // Predicated region
  $region22: #{roberta_classifier_forward.16} parent=0 // pred_check
    _
  $region23: #{roberta_classifier_forward.16} parent=0 // pred_check_branch
    %22 = sbr.rel (0) target = $region25
  $region24: #{roberta_classifier_forward.16} parent=0 // pred_region
    _
  $region25: #{roberta_classifier_forward.16} parent=0 // pred_fallthru
    _
  %p24 = scmp.eq.s32.totalorder 0, 0
  // Predicated region
  $region26: #{roberta_classifier_forward.16} parent=0 // pred_check
    %p25 = pneg %p24
  $region27: #{roberta_classifier_forward.16} parent=0 // pred_check_branch
    %27 = sbr.rel (%p25) target = $region29
  $region28: #{roberta_classifier_forward.16} parent=0 // pred_region
    %vm28 = vcmask 261120
    %29 = vst.msk [vmem:[#allocation2] sm:$0xff] %vm28, 0.0
    %30 = vst.msk [vmem:[#allocation2 + $0x8] sm:$0xff] %vm28, 0.0
  $region29: #{roberta_classifier_forward.16} parent=0 // pred_fallthru
    _
  %v31 = vld [vmem:[#allocation2] sm:$0xff]
  %v32 = vld [vmem:[#allocation2 + $0x8] sm:$0xff]
  %v33 = vld [vmem:[%s0] sm:$0xf]
  %v34 = vld [vmem:[%s0 + $0x4] sm:$0xf]
  %v35 = vld [vmem:[%s1] sm:$0xf]
  %v36 = vld [vmem:[%s1 + $0x4] sm:$0xf]
  %v37 = vld [vmem:[%s1 + $0x8] sm:$0xf]
  %v38 = vld [vmem:[%s1 + $0xc] sm:$0xf]
  %v41 = vunpack.c.l.b16 %v33
  %v42 = vunpack.c.l.b16 %v34
  %v43 = vpack.c.b16 %v42, %v41
  %v48 = vunpack.c.l.b16 %v35
  %v49 = vunpack.c.l.b16 %v36
  %v50 = vunpack.c.l.b16 %v37
  %v51 = vunpack.c.l.b16 %v38
  %v52 = vpack.c.b16 %v49, %v48
  %v53 = vpack.c.b16 %v51, %v50
  %vm56 = vcmask 261120
  %v58 = vsel %vm56, %v43, 0
  %60 = vmatprep.subr.bf16.mxu0 0
  %61 = vmatpush1.bf16.msra.mxu0 0
  %62 = vmatprep.subr.bf16.mxu0 0
  %63 = vmatpush1.bf16.msra.mxu0 0
  %64 = vmatprep.subr.bf16.mxu0 0
  %65 = vmatpush1.bf16.msra.mxu0 0
  %66 = vmatprep.subr.bf16.mxu0 0
  %67 = vmatpush1.bf16.msra.mxu0 0
  %68 = vmatprep.subr.bf16.mxu0 0
  %69 = vmatpush1.bf16.msra.mxu0 0
  %70 = vmatprep.subr.bf16.mxu0 0
  %71 = vmatpush1.bf16.msra.mxu0 0
  %72 = vmatprep.subr.bf16.mxu0 0
  %73 = vmatpush1.bf16.msra.mxu0 %v53
  %74 = vmatprep.subr.bf16.mxu0 0
  %75 = vmatpush1.bf16.msra.mxu0 %v52
  %76 = vmatprep.subr.bf16.mxu0 0
  %77 = vmatpush2.bf16.msra.mxu0 0
  %78 = vmatprep.subr.bf16.mxu0 0
  %79 = vmatpush2.bf16.msra.mxu0 0
  %80 = vmatprep.subr.bf16.mxu0 0
  %81 = vmatpush2.bf16.msra.mxu0 0
  %82 = vmatprep.subr.bf16.mxu0 0
  %83 = vmatpush2.bf16.msra.mxu0 0
  %84 = vmatprep.subr.bf16.mxu0 0
  %85 = vmatpush2.bf16.msra.mxu0 0
  %86 = vmatprep.subr.bf16.mxu0 0
  %87 = vmatpush2.bf16.msra.mxu0 0
  %88 = vmatprep.subr.bf16.mxu0 0
  %89 = vmatpush2.bf16.msra.mxu0 0
  %90 = vmatprep.subr.bf16.mxu0 0
  %91 = vmatpush2.bf16.msra.mxu0 0
  %92 = vmatprep.mubr.bf16.mxu0 0
  %93 = vmatmul.mubr.bf16.gmra.mxu0 %v58
  %v94 = vpop.f32.mrf.mxu0
  %v95 = vadd.f32 0.0, %v94
  %v96 = vpop.f32.mrf.mxu0
  %v97 = vpop.f32.mrf.mxu0
  %v98 = vadd.f32 0.0, %v97
  %v99 = vpop.f32.mrf.mxu0
  %100 = vdwg.mxu0
  %v101 = vadd.f32 %v31, %v95
  %v102 = vadd.f32 %v32, %v98
  %103 = vst.msk [vmem:[#allocation2] sm:$0xff] %vm56, %v101
  %104 = vst.msk [vmem:[#allocation2 + $0x8] sm:$0xff] %vm56, %v102
  // Predicated region
  $region30: #{roberta_classifier_forward.16} parent=0 // pred_check
    %p105 = pneg %p24
  $region31: #{roberta_classifier_forward.16} parent=0 // pred_check_branch
    %107 = sbr.rel (%p105) target = $region33
  $region32: #{roberta_classifier_forward.16} parent=0 // pred_region
    %v108 = vld [vmem:[#allocation2] sm:$0xff]
    %v109 = vld [vmem:[#allocation2 + $0x8] sm:$0xff]
    %v110 = vld [vmem:[%s2] sm:$0x1]
    %v112 = vlaneseq
    %v113 = vshrl.u32 %v112, 7
    %v114 = vsub.s32 0, %v113
    %v115 = vrot.slane %v110, %v114
    %v117 = vadd.f32 %v108, %v115
    %v118 = vadd.f32 %v109, %v115
    %v119 = vld [vmem:[%s3] sm:$0xf]
    %v120 = vld [vmem:[%s3 + $0x4] sm:$0xf]
    %v121 = vunpack.c.l.bf16 %v119
    %v122 = vunpack.c.l.bf16 %v120
    %v123 = vadd.f32 %v117, %v121
    %v124 = vadd.f32 %v118, %v122
    %v125 = vsel %vm56, %v123, 0.0
    %126 = vadd.xlane.f32.xlu0 %v125
    %v127 = vpop.xlane.xlu0 %126
    %v128 = vsel %vm56, %v124, 0.0
    %129 = vadd.xlane.f32.xlu0 %v128
    %v130 = vpop.xlane.xlu0 %129
    %v131 = vrcp.pop 32.0
    %v132 = vmul.f32 %v127, %v131
    %v133 = vmul.f32 %v130, %v131
    %v134 = vsub.f32 %v123, %v132
    %v135 = vsub.f32 %v124, %v133
    %v136 = vmul.f32 %v134, %v134
    %v137 = vmul.f32 %v135, %v135
    %v138 = vsel %vm56, %v136, 0.0
    %139 = vadd.xlane.f32.xlu0 %v138
    %v140 = vpop.xlane.xlu0 %139
    %v141 = vsel %vm56, %v137, 0.0
    %142 = vadd.xlane.f32.xlu0 %v141
    %v143 = vpop.xlane.xlu0 %142
    %v144 = vmul.f32 %v140, %v131
    %v145 = vmul.f32 %v143, %v131
    %v146 = vadd.f32 %v144, 1e-05
    %v147 = vadd.f32 %v145, 1e-05
    %v148 = vrsqrt.pop %v146
    %v149 = vrsqrt.pop %v147
    %v150 = vmul.f32 %v134, %v148
    %v151 = vmul.f32 %v135, %v149
    %v152 = vld [vmem:[%s4] sm:$0x1]
    %v154 = vlaneseq
    %v155 = vshrl.u32 %v154, 7
    %v156 = vsub.s32 0, %v155
    %v157 = vrot.slane %v152, %v156
    %v159 = vmul.f32 %v150, %v157
    %v160 = vmul.f32 %v151, %v157
    %v161 = vld [vmem:[%s5] sm:$0x1]
    %v163 = vlaneseq
    %v164 = vshrl.u32 %v163, 7
    %v165 = vsub.s32 0, %v164
    %v166 = vrot.slane %v161, %v165
    %v168 = vadd.f32 %v159, %v166
    %v169 = vadd.f32 %v160, %v166
    %v170 = vpack.c.bf16 %v169, %v168
    %v172 = vunpack.c.l.b16 %v170
    %v173 = vunpack.c.h.b16 %v170
    %v174 = vpack.c.b16 %v172, %v172
    %v175 = vpack.c.b16 %v173, %v173
    %vm178 = vcmask 257024
    %179 = vst.msk [vmem:[%s6] sm:$0xf] %vm178, %v174
    %180 = vst.msk [vmem:[%s6 + $0x4] sm:$0xf] %vm178, %v175
  $region33: #{roberta_classifier_forward.16} parent=0 // pred_fallthru
    _
  // Predicated region
  $region34: #{roberta_classifier_forward.16} parent=0 // pred_check
    _
  $region35: #{roberta_classifier_forward.16} parent=0 // pred_check_branch
    %182 = sbr.rel (0) target = $region37
  $region36: #{roberta_classifier_forward.16} parent=0 // pred_region
    _
  $region37: #{roberta_classifier_forward.16} parent=0 // pred_fallthru
    _
  // Predicated region
  $region38: #{roberta_classifier_forward.16} parent=0 // pred_check
    _
  $region39: #{roberta_classifier_forward.16} parent=0 // pred_check_branch
    %184 = sbr.rel (0) target = $region41
  $region40: #{roberta_classifier_forward.16} parent=0 // pred_region
    _
  $region41: #{roberta_classifier_forward.16} parent=0 // pred_fallthru
    _

// kernel: roberta_classifier_forward.15
$region0: #{roberta_classifier_forward.15}
  #allocation0 [shape = 'u32[]', space=smem, size = 0x4, offset = 0x4, fixed_abs, tag = 'smem constant byte address 0x4 - core index']
  #allocation1 [shape = 'u32[144,128]{1,0:T(1,128)}', space=vmem, size = 0x12000, scoped, tag = 'internal scratch']
  %s0 = inlined_call_operand.vmem [shape: bf16[2,8,96], index: 0, kind: input, shape index: {}]
  %s1 = inlined_call_operand.vmem [shape: f32[2,1,8], index: 1, kind: input, shape index: {}]
  %s2 = inlined_call_operand.vmem [shape: bf16[2,8,32], index: 2, kind: output, shape index: {}]
  %s3 = sld [smem:[#allocation0]]
  $region41: #{roberta_classifier_forward.15} parent=0
    _
  %s5 = ssub.s32 1, %s3
  %s6 = scalar_select 0, %s5, %s3
  loop: start=0, step=1, limit=4
  $region2: #{roberta_classifier_forward.15} parent=0 // loop_pre_header
    _
  $region3: #{roberta_classifier_forward.15} parent=0 // loop_header
    %s8 = sphi 0, %s12
    %p9 = scmp.ge.s32.totalorder %s8, 4
    %s18 = sphi 0, %s20
    %s21 = sphi 0, %s18
    %s22 = sphi 0, %s21
    %s38 = sphi 0, %s22
    %s44 = sphi 0, %s46
    %s47 = sphi 0, %s44
    %s48 = sphi 0, %s47
    %s64 = sphi 0, %s48
    %s70 = sphi 0, %s72
    %s73 = sphi 0, %s70
    %s74 = sphi 0, %s73
    %s90 = sphi 0, %s74
  $region4: #{roberta_classifier_forward.15} parent=0 // loop_header_branch
    %11 = sbr.rel (%p9) target = $region8
  $region5: #{roberta_classifier_forward.15} parent=0 // loop_body
    %s13 = ssub.s32 %s8, 1
    %s14 = ssub.s32 %s8, 2
    %s15 = sadd.s32 %s8, 1
    %s16 = ssub.s32 %s8, %s15
    %p17 = scmp.eq.s32.totalorder %s16, 0
    %s19 = sadd.s32 %s18, 1
    %s20 = scalar_select %p17, %s18, %s19
    %p23 = pneg %p17
    %p24 = scmp.eq.s32.totalorder %s8, 1
    %p25 = por %p23, %p24
    %p26 = scmp.ne.s32.totalorder %s18, %s21
    %p27 = scmp.eq.s32.totalorder %s8, 0
    %p28 = por %p26, %p27
    %p29 = scmp.ne.s32.totalorder %s18, %s21
    %p30 = scmp.eq.s32.totalorder %s13, 1
    %p31 = por %p29, %p30
    %p32 = scmp.ne.s32.totalorder %s21, %s22
    %p33 = scmp.eq.s32.totalorder %s13, 0
    %p34 = por %p32, %p33
    %p35 = scmp.ne.s32.totalorder %s21, %s22
    %p36 = scmp.eq.s32.totalorder %s14, 1
    %p37 = por %p35, %p36
    %p39 = scmp.ne.s32.totalorder %s22, %s38
    %p40 = scmp.eq.s32.totalorder %s14, 0
    %p41 = por %p39, %p40
    %s42 = ssub.s32 %s8, %s15
    %p43 = scmp.eq.s32.totalorder %s42, 0
    %s45 = sadd.s32 %s44, 1
    %s46 = scalar_select %p43, %s44, %s45
    %p49 = pneg %p43
    %p50 = scmp.eq.s32.totalorder %s8, 1
    %p51 = por %p49, %p50
    %p52 = scmp.ne.s32.totalorder %s44, %s47
    %p53 = scmp.eq.s32.totalorder %s8, 0
    %p54 = por %p52, %p53
    %p55 = scmp.ne.s32.totalorder %s44, %s47
    %p56 = scmp.eq.s32.totalorder %s13, 1
    %p57 = por %p55, %p56
    %p58 = scmp.ne.s32.totalorder %s47, %s48
    %p59 = scmp.eq.s32.totalorder %s13, 0
    %p60 = por %p58, %p59
    %p61 = scmp.ne.s32.totalorder %s47, %s48
    %p62 = scmp.eq.s32.totalorder %s14, 1
    %p63 = por %p61, %p62
    %p65 = scmp.ne.s32.totalorder %s48, %s64
    %p66 = scmp.eq.s32.totalorder %s14, 0
    %p67 = por %p65, %p66
    %s68 = ssub.s32 %s8, %s15
    %p69 = scmp.eq.s32.totalorder %s68, 0
    %s71 = sadd.s32 %s70, 1
    %s72 = scalar_select %p69, %s70, %s71
    %p75 = pneg %p69
    %p76 = scmp.eq.s32.totalorder %s8, 1
    %p77 = por %p75, %p76
    %p78 = scmp.ne.s32.totalorder %s70, %s73
    %p79 = scmp.eq.s32.totalorder %s8, 0
    %p80 = por %p78, %p79
    %p81 = scmp.ne.s32.totalorder %s70, %s73
    %p82 = scmp.eq.s32.totalorder %s13, 1
    %p83 = por %p81, %p82
    %p84 = scmp.ne.s32.totalorder %s73, %s74
    %p85 = scmp.eq.s32.totalorder %s13, 0
    %p86 = por %p84, %p85
    %p87 = scmp.ne.s32.totalorder %s73, %s74
    %p88 = scmp.eq.s32.totalorder %s14, 1
    %p89 = por %p87, %p88
    %p91 = scmp.ne.s32.totalorder %s74, %s90
    %p92 = scmp.eq.s32.totalorder %s14, 0
    %p93 = por %p91, %p92
    %p94 = scmp.le.s32.totalorder 1, %s8
    %p95 = scmp.lt.s32.totalorder %s8, 3
    %p96 = pnand %p94, %p95
    %p97 = pneg %p96
    // Predicated region
    $region9: #{roberta_classifier_forward.15} parent=5 // pred_check
      _
    $region10: #{roberta_classifier_forward.15} parent=5 // pred_check_branch
      %99 = sbr.rel (%p96) target = $region12
    $region11: #{roberta_classifier_forward.15} parent=5 // pred_region
      %s100 = ssub.s32 %s8, 1
    $region12: #{roberta_classifier_forward.15} parent=5 // pred_fallthru
      _
    %p101 = scmp.lt.s32.totalorder %s8, 2
    // Predicated region
    $region13: #{roberta_classifier_forward.15} parent=5 // pred_check
      %p102 = pneg %p101
    $region14: #{roberta_classifier_forward.15} parent=5 // pred_check_branch
      %104 = sbr.rel (%p102) target = $region16
    $region15: #{roberta_classifier_forward.15} parent=5 // pred_region
      // Predicated region
      $region17: #{roberta_classifier_forward.15} parent=15 // pred_check
        %p105 = pneg %p28
      $region18: #{roberta_classifier_forward.15} parent=15 // pred_check_branch
        %107 = sbr.rel (%p105) target = $region20
      $region19: #{roberta_classifier_forward.15} parent=15 // pred_region
        %p108 = scmp.lt.s32.totalorder %s8, 1
        %s109 = scalar_select %p108, %s8, 1
        %s110 = smul.addr %s109, 4
        %s111 = scalar_lea.vmem %s0, %s110
      $region20: #{roberta_classifier_forward.15} parent=15 // pred_fallthru
        _
      // Predicated region
      $region21: #{roberta_classifier_forward.15} parent=15 // pred_check
        %p112 = pneg %p54
      $region22: #{roberta_classifier_forward.15} parent=15 // pred_check_branch
        %114 = sbr.rel (%p112) target = $region24
      $region23: #{roberta_classifier_forward.15} parent=15 // pred_region
        %p115 = scmp.lt.s32.totalorder %s8, 1
        %s116 = scalar_select %p115, %s8, 1
        %s117 = scalar_lea.vmem %s1, %s116
      $region24: #{roberta_classifier_forward.15} parent=15 // pred_fallthru
        _
    $region16: #{roberta_classifier_forward.15} parent=5 // pred_fallthru
      _
    %p118 = scmp.le.s32.totalorder 1, %s8
    %p119 = scmp.lt.s32.totalorder %s8, 3
    %p120 = pnand %p118, %p119
    %p121 = pneg %p120
    // Predicated region
    $region25: #{roberta_classifier_forward.15} parent=5 // pred_check
      _
    $region26: #{roberta_classifier_forward.15} parent=5 // pred_check_branch
      %123 = sbr.rel (%p120) target = $region28
    $region27: #{roberta_classifier_forward.15} parent=5 // pred_region
      %s124 = ssub.s32 %s8, 1
      %p125 = scmp.lt.s32.totalorder %s13, 1
      %s126 = scalar_select %p125, %s13, 1
      %s127 = smul.addr %s126, 4
      %s128 = scalar_lea.vmem %s0, %s127
      %p129 = pneg %p34
      %p130 = pneg %p31
      %p131 = scmp.lt.s32.totalorder %s13, 1
      %s132 = scalar_select %p131, %s13, 1
      %s133 = scalar_lea.vmem %s1, %s132
      %p134 = pneg %p60
      %p135 = pneg %p57
      %p136 = pneg %p86
      %p137 = pneg %p83
      %p138 = scmp.lt.s32.totalorder %s13, 1
      %s139 = scalar_select %p138, %s13, 1
      %s140 = smul.addr %s139, 4
      %s141 = scalar_lea.vmem %s2, %s140
      %p142 = scmp.lt.s32.totalorder %s13, 1
      %s143 = scalar_select %p142, %s13, 1
      %s144 = smul.addr %s143, 4
      %s145 = scalar_lea.vmem %s0, %s144
      %p146 = scmp.lt.s32.totalorder %s13, 1
      %s147 = scalar_select %p146, %s13, 1
      %s148 = scalar_lea.vmem %s1, %s147
      %p149 = scmp.lt.s32.totalorder %s13, 1
      %s150 = scalar_select %p149, %s13, 1
      %s151 = smul.addr %s150, 4
      %s152 = scalar_lea.vmem %s2, %s151
      %v154 = vld [vmem:[%s145] sm:$0xf]
      %v155 = vld [vmem:[%s148] sm:$0x1]
      %v156 = vunpack.c.l.bf16 %v154
      %v157 = vmul.f32 %v156, 0.35355338
      %v158 = vpack.c.bf16 %v157, %v157
      %v160 = vlaneseq
      %v161 = vshrl.u32 %v160, 7
      %v162 = vsub.s32 0, %v161
      %v163 = vrot.slane %v155, %v162
      %v166 = vunpack.c.l.b16 %v154
      %v167 = vpack.c.b16 %v166, %v166
      %168 = vrot.lane.b32.xlu0 %v167, 96
      %v169 = vpop.permute.xlu0 %168
      %vm170 = vcmask 64512
      %v172 = vsel %vm170, %v158, 0
      %v175 = vsel %vm170, %v169, 0
      %177 = vmatprep.subr.bf16.mxu0 0
      %178 = vmatpush1.bf16.xpose.msra.mxu0 0
      %179 = vmatprep.subr.bf16.mxu0 0
      %180 = vmatpush1.bf16.xpose.msra.mxu0 0
      %181 = vmatprep.subr.bf16.mxu0 0
      %182 = vmatpush1.bf16.xpose.msra.mxu0 0
      %183 = vmatprep.subr.bf16.mxu0 0
      %184 = vmatpush1.bf16.xpose.msra.mxu0 0
      %185 = vmatprep.subr.bf16.mxu0 0
      %186 = vmatpush1.bf16.xpose.msra.mxu0 0
      %187 = vmatprep.subr.bf16.mxu0 0
      %188 = vmatpush1.bf16.xpose.msra.mxu0 0
      %189 = vmatprep.subr.bf16.mxu0 0
      %190 = vmatpush1.bf16.xpose.msra.mxu0 0
      %191 = vmatprep.subr.bf16.mxu0 0
      %192 = vmatpush1.bf16.xpose.msra.mxu0 %v175
      %193 = vmatprep.subr.bf16.mxu0 0
      %194 = vmatpush2.bf16.xpose.msra.mxu0 0
      %195 = vmatprep.subr.bf16.mxu0 0
      %196 = vmatpush2.bf16.xpose.msra.mxu0 0
      %197 = vmatprep.subr.bf16.mxu0 0
      %198 = vmatpush2.bf16.xpose.msra.mxu0 0
      %199 = vmatprep.subr.bf16.mxu0 0
      %200 = vmatpush2.bf16.xpose.msra.mxu0 0
      %201 = vmatprep.subr.bf16.mxu0 0
      %202 = vmatpush2.bf16.xpose.msra.mxu0 0
      %203 = vmatprep.subr.bf16.mxu0 0
      %204 = vmatpush2.bf16.xpose.msra.mxu0 0
      %205 = vmatprep.subr.bf16.mxu0 0
      %206 = vmatpush2.bf16.xpose.msra.mxu0 0
      %207 = vmatprep.subr.bf16.mxu0 0
      %208 = vmatpush2.bf16.xpose.msra.mxu0 0
      %209 = vmatprep.mubr.bf16.mxu0 0
      %210 = vmatmul.mubr.bf16.gmra.mxu0 %v172
      %v211 = vpop.f32.mrf.mxu0
      %v212 = vadd.f32 %v163, %v211
      %v213 = vpop.f32.mrf.mxu0
      %v214 = vpop.f32.mrf.mxu0
      %v215 = vpop.f32.mrf.mxu0
      %216 = vdwg.mxu0
      %v217 = vsel %vm170, %v212, -inf
      %218 = vmax.xlane.f32.xlu0 %v217
      %v219 = vpop.xlane.xlu0 %218
      %v220 = vsub.f32 %v212, %v219
      %v221 = vmul.f32 %v220, 1.442695
      %v222 = vpow.pop %v221
      %v223 = vsel %vm170, %v222, 0.0
      %224 = vadd.xlane.f32.xlu0 %v223
      %v225 = vpop.xlane.xlu0 %224
      %v226 = vrcp.pop %v225
      %v227 = vmul.f32 %v222, %v226
      %v228 = vpack.c.bf16 %v227, %v227
      %229 = vrot.lane.b32.xlu0 %v167, 64
      %v230 = vpop.permute.xlu0 %229
      %v232 = vsel %vm170, %v228, 0
      %vm234 = vcmask 1043456
      %v236 = vsel %vm234, %v230, 0
      %238 = vmatprep.subr.bf16.mxu0 0
      %239 = vmatpush1.bf16.msra.mxu0 0
      %240 = vmatprep.subr.bf16.mxu0 0
      %241 = vmatpush1.bf16.msra.mxu0 0
      %242 = vmatprep.subr.bf16.mxu0 0
      %243 = vmatpush1.bf16.msra.mxu0 0
      %244 = vmatprep.subr.bf16.mxu0 0
      %245 = vmatpush1.bf16.msra.mxu0 0
      %246 = vmatprep.subr.bf16.mxu0 0
      %247 = vmatpush1.bf16.msra.mxu0 0
      %248 = vmatprep.subr.bf16.mxu0 0
      %249 = vmatpush1.bf16.msra.mxu0 0
      %250 = vmatprep.subr.bf16.mxu0 0
      %251 = vmatpush1.bf16.msra.mxu0 0
      %252 = vmatprep.subr.bf16.mxu0 0
      %253 = vmatpush1.bf16.msra.mxu0 %v236
      %254 = vmatprep.subr.bf16.mxu0 0
      %255 = vmatpush2.bf16.msra.mxu0 0
      %256 = vmatprep.subr.bf16.mxu0 0
      %257 = vmatpush2.bf16.msra.mxu0 0
      %258 = vmatprep.subr.bf16.mxu0 0
      %259 = vmatpush2.bf16.msra.mxu0 0
      %260 = vmatprep.subr.bf16.mxu0 0
      %261 = vmatpush2.bf16.msra.mxu0 0
      %262 = vmatprep.subr.bf16.mxu0 0
      %263 = vmatpush2.bf16.msra.mxu0 0
      %264 = vmatprep.subr.bf16.mxu0 0
      %265 = vmatpush2.bf16.msra.mxu0 0
      %266 = vmatprep.subr.bf16.mxu0 0
      %267 = vmatpush2.bf16.msra.mxu0 0
      %268 = vmatprep.subr.bf16.mxu0 0
      %269 = vmatpush2.bf16.msra.mxu0 0
      %270 = vmatprep.mubr.bf16.mxu0 0
      %271 = vmatmul.mubr.bf16.gmra.mxu0 %v232
      %v272 = vpop.f32.mrf.mxu0
      %v273 = vadd.f32 0.0, %v272
      %v274 = vpop.f32.mrf.mxu0
      %v275 = vpop.f32.mrf.mxu0
      %v276 = vpop.f32.mrf.mxu0
      %277 = vdwg.mxu0
      %279 = vrot.lane.b32.xlu0 %v158, 120
      %v280 = vpop.permute.xlu0 %279
      %281 = vrot.lane.b32.xlu0 %v167, 88
      %v282 = vpop.permute.xlu0 %281
      %v284 = vsel %vm170, %v280, 0
      %v287 = vsel %vm170, %v282, 0
      %289 = vmatprep.subr.bf16.mxu0 0
      %290 = vmatpush1.bf16.xpose.msra.mxu0 0
      %291 = vmatprep.subr.bf16.mxu0 0
      %292 = vmatpush1.bf16.xpose.msra.mxu0 0
      %293 = vmatprep.subr.bf16.mxu0 0
      %294 = vmatpush1.bf16.xpose.msra.mxu0 0
      %295 = vmatprep.subr.bf16.mxu0 0
      %296 = vmatpush1.bf16.xpose.msra.mxu0 0
      %297 = vmatprep.subr.bf16.mxu0 0
      %298 = vmatpush1.bf16.xpose.msra.mxu0 0
      %299 = vmatprep.subr.bf16.mxu0 0
      %300 = vmatpush1.bf16.xpose.msra.mxu0 0
      %301 = vmatprep.subr.bf16.mxu0 0
      %302 = vmatpush1.bf16.xpose.msra.mxu0 0
      %303 = vmatprep.subr.bf16.mxu0 0
      %304 = vmatpush1.bf16.xpose.msra.mxu0 %v287
      %305 = vmatprep.subr.bf16.mxu0 0
      %306 = vmatpush2.bf16.xpose.msra.mxu0 0
      %307 = vmatprep.subr.bf16.mxu0 0
      %308 = vmatpush2.bf16.xpose.msra.mxu0 0
      %309 = vmatprep.subr.bf16.mxu0 0
      %310 = vmatpush2.bf16.xpose.msra.mxu0 0
      %311 = vmatprep.subr.bf16.mxu0 0
      %312 = vmatpush2.bf16.xpose.msra.mxu0 0
      %313 = vmatprep.subr.bf16.mxu0 0
      %314 = vmatpush2.bf16.xpose.msra.mxu0 0
      %315 = vmatprep.subr.bf16.mxu0 0
      %316 = vmatpush2.bf16.xpose.msra.mxu0 0
      %317 = vmatprep.subr.bf16.mxu0 0
      %318 = vmatpush2.bf16.xpose.msra.mxu0 0
      %319 = vmatprep.subr.bf16.mxu0 0
      %320 = vmatpush2.bf16.xpose.msra.mxu0 0
      %321 = vmatprep.mubr.bf16.mxu0 0
      %322 = vmatmul.mubr.bf16.gmra.mxu0 %v284
      %v323 = vpop.f32.mrf.mxu0
      %v324 = vadd.f32 %v163, %v323
      %v325 = vpop.f32.mrf.mxu0
      %v326 = vpop.f32.mrf.mxu0
      %v327 = vpop.f32.mrf.mxu0
      %328 = vdwg.mxu0
      %v329 = vsel %vm170, %v324, -inf
      %330 = vmax.xlane.f32.xlu0 %v329
      %v331 = vpop.xlane.xlu0 %330
      %v332 = vsub.f32 %v324, %v331
      %v333 = vmul.f32 %v332, 1.442695
      %v334 = vpow.pop %v333
      %v335 = vsel %vm170, %v334, 0.0
      %336 = vadd.xlane.f32.xlu0 %v335
      %v337 = vpop.xlane.xlu0 %336
      %v338 = vrcp.pop %v337
      %v339 = vmul.f32 %v334, %v338
      %v340 = vpack.c.bf16 %v339, %v339
      %341 = vrot.lane.b32.xlu0 %v167, 56
      %v342 = vpop.permute.xlu0 %341
      %v344 = vsel %vm170, %v340, 0
      %v347 = vsel %vm234, %v342, 0
      %349 = vmatprep.subr.bf16.mxu0 0
      %350 = vmatpush1.bf16.msra.mxu0 0
      %351 = vmatprep.subr.bf16.mxu0 0
      %352 = vmatpush1.bf16.msra.mxu0 0
      %353 = vmatprep.subr.bf16.mxu0 0
      %354 = vmatpush1.bf16.msra.mxu0 0
      %355 = vmatprep.subr.bf16.mxu0 0
      %356 = vmatpush1.bf16.msra.mxu0 0
      %357 = vmatprep.subr.bf16.mxu0 0
      %358 = vmatpush1.bf16.msra.mxu0 0
      %359 = vmatprep.subr.bf16.mxu0 0
      %360 = vmatpush1.bf16.msra.mxu0 0
      %361 = vmatprep.subr.bf16.mxu0 0
      %362 = vmatpush1.bf16.msra.mxu0 0
      %363 = vmatprep.subr.bf16.mxu0 0
      %364 = vmatpush1.bf16.msra.mxu0 %v347
      %365 = vmatprep.subr.bf16.mxu0 0
      %366 = vmatpush2.bf16.msra.mxu0 0
      %367 = vmatprep.subr.bf16.mxu0 0
      %368 = vmatpush2.bf16.msra.mxu0 0
      %369 = vmatprep.subr.bf16.mxu0 0
      %370 = vmatpush2.bf16.msra.mxu0 0
      %371 = vmatprep.subr.bf16.mxu0 0
      %372 = vmatpush2.bf16.msra.mxu0 0
      %373 = vmatprep.subr.bf16.mxu0 0
      %374 = vmatpush2.bf16.msra.mxu0 0
      %375 = vmatprep.subr.bf16.mxu0 0
      %376 = vmatpush2.bf16.msra.mxu0 0
      %377 = vmatprep.subr.bf16.mxu0 0
      %378 = vmatpush2.bf16.msra.mxu0 0
      %379 = vmatprep.subr.bf16.mxu0 0
      %380 = vmatpush2.bf16.msra.mxu0 0
      %381 = vmatprep.mubr.bf16.mxu0 0
      %382 = vmatmul.mubr.bf16.gmra.mxu0 %v344
      %v383 = vpop.f32.mrf.mxu0
      %v384 = vadd.f32 0.0, %v383
      %v385 = vpop.f32.mrf.mxu0
      %v386 = vpop.f32.mrf.mxu0
      %v387 = vpop.f32.mrf.mxu0
      %388 = vdwg.mxu0
      %389 = vrot.lane.b32.xlu0 %v158, 112
      %v390 = vpop.permute.xlu0 %389
      %391 = vrot.lane.b32.xlu0 %v167, 80
      %v392 = vpop.permute.xlu0 %391
      %v394 = vsel %vm170, %v390, 0
      %v397 = vsel %vm170, %v392, 0
      %399 = vmatprep.subr.bf16.mxu0 0
      %400 = vmatpush1.bf16.xpose.msra.mxu0 0
      %401 = vmatprep.subr.bf16.mxu0 0
      %402 = vmatpush1.bf16.xpose.msra.mxu0 0
      %403 = vmatprep.subr.bf16.mxu0 0
      %404 = vmatpush1.bf16.xpose.msra.mxu0 0
      %405 = vmatprep.subr.bf16.mxu0 0
      %406 = vmatpush1.bf16.xpose.msra.mxu0 0
      %407 = vmatprep.subr.bf16.mxu0 0
      %408 = vmatpush1.bf16.xpose.msra.mxu0 0
      %409 = vmatprep.subr.bf16.mxu0 0
      %410 = vmatpush1.bf16.xpose.msra.mxu0 0
      %411 = vmatprep.subr.bf16.mxu0 0
      %412 = vmatpush1.bf16.xpose.msra.mxu0 0
      %413 = vmatprep.subr.bf16.mxu0 0
      %414 = vmatpush1.bf16.xpose.msra.mxu0 %v397
      %415 = vmatprep.subr.bf16.mxu0 0
      %416 = vmatpush2.bf16.xpose.msra.mxu0 0
      %417 = vmatprep.subr.bf16.mxu0 0
      %418 = vmatpush2.bf16.xpose.msra.mxu0 0
      %419 = vmatprep.subr.bf16.mxu0 0
      %420 = vmatpush2.bf16.xpose.msra.mxu0 0
      %421 = vmatprep.subr.bf16.mxu0 0
      %422 = vmatpush2.bf16.xpose.msra.mxu0 0
      %423 = vmatprep.subr.bf16.mxu0 0
      %424 = vmatpush2.bf16.xpose.msra.mxu0 0
      %425 = vmatprep.subr.bf16.mxu0 0
      %426 = vmatpush2.bf16.xpose.msra.mxu0 0
      %427 = vmatprep.subr.bf16.mxu0 0
      %428 = vmatpush2.bf16.xpose.msra.mxu0 0
      %429 = vmatprep.subr.bf16.mxu0 0
      %430 = vmatpush2.bf16.xpose.msra.mxu0 0
      %431 = vmatprep.mubr.bf16.mxu0 0
      %432 = vmatmul.mubr.bf16.gmra.mxu0 %v394
      %v433 = vpop.f32.mrf.mxu0
      %v434 = vadd.f32 %v163, %v433
      %v435 = vpop.f32.mrf.mxu0
      %v436 = vpop.f32.mrf.mxu0
      %v437 = vpop.f32.mrf.mxu0
      %438 = vdwg.mxu0
      %v439 = vsel %vm170, %v434, -inf
      %440 = vmax.xlane.f32.xlu0 %v439
      %v441 = vpop.xlane.xlu0 %440
      %v442 = vsub.f32 %v434, %v441
      %v443 = vmul.f32 %v442, 1.442695
      %v444 = vpow.pop %v443
      %v445 = vsel %vm170, %v444, 0.0
      %446 = vadd.xlane.f32.xlu0 %v445
      %v447 = vpop.xlane.xlu0 %446
      %v448 = vrcp.pop %v447
      %v449 = vmul.f32 %v444, %v448
      %v450 = vpack.c.bf16 %v449, %v449
      %451 = vrot.lane.b32.xlu0 %v167, 48
      %v452 = vpop.permute.xlu0 %451
      %v454 = vsel %vm170, %v450, 0
      %v457 = vsel %vm234, %v452, 0
      %459 = vmatprep.subr.bf16.mxu0 0
      %460 = vmatpush1.bf16.msra.mxu0 0
      %461 = vmatprep.subr.bf16.mxu0 0
      %462 = vmatpush1.bf16.msra.mxu0 0
      %463 = vmatprep.subr.bf16.mxu0 0
      %464 = vmatpush1.bf16.msra.mxu0 0
      %465 = vmatprep.subr.bf16.mxu0 0
      %466 = vmatpush1.bf16.msra.mxu0 0
      %467 = vmatprep.subr.bf16.mxu0 0
      %468 = vmatpush1.bf16.msra.mxu0 0
      %469 = vmatprep.subr.bf16.mxu0 0
      %470 = vmatpush1.bf16.msra.mxu0 0
      %471 = vmatprep.subr.bf16.mxu0 0
      %472 = vmatpush1.bf16.msra.mxu0 0
      %473 = vmatprep.subr.bf16.mxu0 0
      %474 = vmatpush1.bf16.msra.mxu0 %v457
      %475 = vmatprep.subr.bf16.mxu0 0
      %476 = vmatpush2.bf16.msra.mxu0 0
      %477 = vmatprep.subr.bf16.mxu0 0
      %478 = vmatpush2.bf16.msra.mxu0 0
      %479 = vmatprep.subr.bf16.mxu0 0
      %480 = vmatpush2.bf16.msra.mxu0 0
      %481 = vmatprep.subr.bf16.mxu0 0
      %482 = vmatpush2.bf16.msra.mxu0 0
      %483 = vmatprep.subr.bf16.mxu0 0
      %484 = vmatpush2.bf16.msra.mxu0 0
      %485 = vmatprep.subr.bf16.mxu0 0
      %486 = vmatpush2.bf16.msra.mxu0 0
      %487 = vmatprep.subr.bf16.mxu0 0
      %488 = vmatpush2.bf16.msra.mxu0 0
      %489 = vmatprep.subr.bf16.mxu0 0
      %490 = vmatpush2.bf16.msra.mxu0 0
      %491 = vmatprep.mubr.bf16.mxu0 0
      %492 = vmatmul.mubr.bf16.gmra.mxu0 %v454
      %v493 = vpop.f32.mrf.mxu0
      %v494 = vadd.f32 0.0, %v493
      %v495 = vpop.f32.mrf.mxu0
      %v496 = vpop.f32.mrf.mxu0
      %v497 = vpop.f32.mrf.mxu0
      %498 = vdwg.mxu0
      %499 = vrot.lane.b32.xlu0 %v158, 104
      %v500 = vpop.permute.xlu0 %499
      %501 = vrot.lane.b32.xlu0 %v167, 72
      %v502 = vpop.permute.xlu0 %501
      %v504 = vsel %vm170, %v500, 0
      %v507 = vsel %vm170, %v502, 0
      %509 = vmatprep.subr.bf16.mxu0 0
      %510 = vmatpush1.bf16.xpose.msra.mxu0 0
      %511 = vmatprep.subr.bf16.mxu0 0
      %512 = vmatpush1.bf16.xpose.msra.mxu0 0
      %513 = vmatprep.subr.bf16.mxu0 0
      %514 = vmatpush1.bf16.xpose.msra.mxu0 0
      %515 = vmatprep.subr.bf16.mxu0 0
      %516 = vmatpush1.bf16.xpose.msra.mxu0 0
      %517 = vmatprep.subr.bf16.mxu0 0
      %518 = vmatpush1.bf16.xpose.msra.mxu0 0
      %519 = vmatprep.subr.bf16.mxu0 0
      %520 = vmatpush1.bf16.xpose.msra.mxu0 0
      %521 = vmatprep.subr.bf16.mxu0 0
      %522 = vmatpush1.bf16.xpose.msra.mxu0 0
      %523 = vmatprep.subr.bf16.mxu0 0
      %524 = vmatpush1.bf16.xpose.msra.mxu0 %v507
      %525 = vmatprep.subr.bf16.mxu0 0
      %526 = vmatpush2.bf16.xpose.msra.mxu0 0
      %527 = vmatprep.subr.bf16.mxu0 0
      %528 = vmatpush2.bf16.xpose.msra.mxu0 0
      %529 = vmatprep.subr.bf16.mxu0 0
      %530 = vmatpush2.bf16.xpose.msra.mxu0 0
      %531 = vmatprep.subr.bf16.mxu0 0
      %532 = vmatpush2.bf16.xpose.msra.mxu0 0
      %533 = vmatprep.subr.bf16.mxu0 0
      %534 = vmatpush2.bf16.xpose.msra.mxu0 0
      %535 = vmatprep.subr.bf16.mxu0 0
      %536 = vmatpush2.bf16.xpose.msra.mxu0 0
      %537 = vmatprep.subr.bf16.mxu0 0
      %538 = vmatpush2.bf16.xpose.msra.mxu0 0
      %539 = vmatprep.subr.bf16.mxu0 0
      %540 = vmatpush2.bf16.xpose.msra.mxu0 0
      %541 = vmatprep.mubr.bf16.mxu0 0
      %542 = vmatmul.mubr.bf16.gmra.mxu0 %v504
      %v543 = vpop.f32.mrf.mxu0
      %v544 = vadd.f32 %v163, %v543
      %v545 = vpop.f32.mrf.mxu0
      %v546 = vpop.f32.mrf.mxu0
      %v547 = vpop.f32.mrf.mxu0
      %548 = vdwg.mxu0
      %v549 = vsel %vm170, %v544, -inf
      %550 = vmax.xlane.f32.xlu0 %v549
      %v551 = vpop.xlane.xlu0 %550
      %v552 = vsub.f32 %v544, %v551
      %v553 = vmul.f32 %v552, 1.442695
      %v554 = vpow.pop %v553
      %v555 = vsel %vm170, %v554, 0.0
      %556 = vadd.xlane.f32.xlu0 %v555
      %v557 = vpop.xlane.xlu0 %556
      %v558 = vrcp.pop %v557
      %v559 = vmul.f32 %v554, %v558
      %v560 = vpack.c.bf16 %v559, %v559
      %561 = vrot.lane.b32.xlu0 %v167, 40
      %v562 = vpop.permute.xlu0 %561
      %v564 = vsel %vm170, %v560, 0
      %v567 = vsel %vm234, %v562, 0
      %569 = vmatprep.subr.bf16.mxu0 0
      %570 = vmatpush1.bf16.msra.mxu0 0
      %571 = vmatprep.subr.bf16.mxu0 0
      %572 = vmatpush1.bf16.msra.mxu0 0
      %573 = vmatprep.subr.bf16.mxu0 0
      %574 = vmatpush1.bf16.msra.mxu0 0
      %575 = vmatprep.subr.bf16.mxu0 0
      %576 = vmatpush1.bf16.msra.mxu0 0
      %577 = vmatprep.subr.bf16.mxu0 0
      %578 = vmatpush1.bf16.msra.mxu0 0
      %579 = vmatprep.subr.bf16.mxu0 0
      %580 = vmatpush1.bf16.msra.mxu0 0
      %581 = vmatprep.subr.bf16.mxu0 0
      %582 = vmatpush1.bf16.msra.mxu0 0
      %583 = vmatprep.subr.bf16.mxu0 0
      %584 = vmatpush1.bf16.msra.mxu0 %v567
      %585 = vmatprep.subr.bf16.mxu0 0
      %586 = vmatpush2.bf16.msra.mxu0 0
      %587 = vmatprep.subr.bf16.mxu0 0
      %588 = vmatpush2.bf16.msra.mxu0 0
      %589 = vmatprep.subr.bf16.mxu0 0
      %590 = vmatpush2.bf16.msra.mxu0 0
      %591 = vmatprep.subr.bf16.mxu0 0
      %592 = vmatpush2.bf16.msra.mxu0 0
      %593 = vmatprep.subr.bf16.mxu0 0
      %594 = vmatpush2.bf16.msra.mxu0 0
      %595 = vmatprep.subr.bf16.mxu0 0
      %596 = vmatpush2.bf16.msra.mxu0 0
      %597 = vmatprep.subr.bf16.mxu0 0
      %598 = vmatpush2.bf16.msra.mxu0 0
      %599 = vmatprep.subr.bf16.mxu0 0
      %600 = vmatpush2.bf16.msra.mxu0 0
      %601 = vmatprep.mubr.bf16.mxu0 0
      %602 = vmatmul.mubr.bf16.gmra.mxu0 %v564
      %v603 = vpop.f32.mrf.mxu0
      %v604 = vadd.f32 0.0, %v603
      %v605 = vpop.f32.mrf.mxu0
      %v606 = vpop.f32.mrf.mxu0
      %v607 = vpop.f32.mrf.mxu0
      %608 = vdwg.mxu0
      %610 = vrot.lane.b32.xlu0 %v384, 8
      %v611 = vpop.permute.xlu0 %610
      %614 = vrot.lane.b32.xlu0 %v494, 16
      %v615 = vpop.permute.xlu0 %614
      %618 = vrot.lane.b32.xlu0 %v604, 24
      %v619 = vpop.permute.xlu0 %618
      %v621 = vsel %vm170, %v273, %v611
      %vm622 = vcmask 130048
      %v623 = vsel %vm622, %v621, %v615
      %vm624 = vcmask 195584
      %v625 = vsel %vm624, %v623, %v619
      %v626 = vpack.c.bf16 %v625, %v625
      %vm627 = vcmask 257024
      %628 = vst.msk [vmem:[%s152] sm:$0xf] %vm627, %v626
      %p629 = scmp.lt.s32.totalorder %s13, 1
      %s630 = scalar_select %p629, %s13, 1
      %s631 = smul.addr %s630, 4
      %s632 = scalar_lea.vmem %s2, %s631
      // Predicated region
      $region29: #{roberta_classifier_forward.15} parent=27 // pred_check
        %p633 = pneg %p83
      $region30: #{roberta_classifier_forward.15} parent=27 // pred_check_branch
        %635 = sbr.rel (%p633) target = $region32
      $region31: #{roberta_classifier_forward.15} parent=27 // pred_region
        _
      $region32: #{roberta_classifier_forward.15} parent=27 // pred_fallthru
        _
    $region28: #{roberta_classifier_forward.15} parent=5 // pred_fallthru
      _
    %p636 = scmp.le.s32.totalorder 2, %s8
    // Predicated region
    $region33: #{roberta_classifier_forward.15} parent=5 // pred_check
      %p637 = pneg %p636
    $region34: #{roberta_classifier_forward.15} parent=5 // pred_check_branch
      %639 = sbr.rel (%p637) target = $region36
    $region35: #{roberta_classifier_forward.15} parent=5 // pred_region
      %s640 = ssub.s32 %s8, 2
      // Predicated region
      $region37: #{roberta_classifier_forward.15} parent=35 // pred_check
        %p641 = pneg %p89
      $region38: #{roberta_classifier_forward.15} parent=35 // pred_check_branch
        %643 = sbr.rel (%p641) target = $region40
      $region39: #{roberta_classifier_forward.15} parent=35 // pred_region
        %p644 = scmp.lt.s32.totalorder %s14, 1
        %s645 = scalar_select %p644, %s14, 1
        %s646 = smul.addr %s645, 4
        %s647 = scalar_lea.vmem %s2, %s646
      $region40: #{roberta_classifier_forward.15} parent=35 // pred_fallthru
        _
    $region36: #{roberta_classifier_forward.15} parent=5 // pred_fallthru
      _
  $region6: #{roberta_classifier_forward.15} parent=0 // loop_footer
    %s12 = sadd.s32 1, %s8
  $region7: #{roberta_classifier_forward.15} parent=0 // loop_footer_branch
    %7 = sbr.rel target = $region3
  $region8: #{roberta_classifier_forward.15} parent=0 // loop_exit
    _

// kernel: roberta_classifier_forward.17
$region0: #{roberta_classifier_forward.17}
  #allocation0 [shape = 'u32[]', space=smem, size = 0x4, offset = 0x4, fixed_abs, tag = 'smem constant byte address 0x4 - core index']
  #allocation1 [shape = 'u32[144,128]{1,0:T(1,128)}', space=vmem, size = 0x12000, scoped, tag = 'internal scratch']
  #allocation2 [shape = 'f32[16,64]{1,0:T(8,128)}', space=vmem, size = 0x2000, scoped, tag = 'scratch operand']
  %s0 = inlined_call_operand.vmem [shape: bf16[16,32], index: 0, kind: input, shape index: {}]
  %s1 = inlined_call_operand.vmem [shape: bf16[32,64], index: 1, kind: input, shape index: {}]
  %s2 = inlined_call_operand.vmem [shape: f32[1,64], index: 2, kind: input, shape index: {}]
  %s3 = inlined_call_operand.vmem [shape: bf16[16,64], index: 3, kind: output, shape index: {}]
  %s4 = sld [smem:[#allocation0]]
  $region30: #{roberta_classifier_forward.17} parent=0
    _
  %s6 = ssub.s32 1, %s4
  %s7 = scalar_select 0, %s6, %s4
  // Predicated region
  $region2: #{roberta_classifier_forward.17} parent=0 // pred_check
    _
  $region3: #{roberta_classifier_forward.17} parent=0 // pred_check_branch
    %9 = sbr.rel (0) target = $region5
  $region4: #{roberta_classifier_forward.17} parent=0 // pred_region
    _
  $region5: #{roberta_classifier_forward.17} parent=0 // pred_fallthru
    _
  // Predicated region
  $region6: #{roberta_classifier_forward.17} parent=0 // pred_check
    _
  $region7: #{roberta_classifier_forward.17} parent=0 // pred_check_branch
    %11 = sbr.rel (0) target = $region9
  $region8: #{roberta_classifier_forward.17} parent=0 // pred_region
    _
  $region9: #{roberta_classifier_forward.17} parent=0 // pred_fallthru
    _
  // Predicated region
  $region10: #{roberta_classifier_forward.17} parent=0 // pred_check
    _
  $region11: #{roberta_classifier_forward.17} parent=0 // pred_check_branch
    %13 = sbr.rel (0) target = $region13
  $region12: #{roberta_classifier_forward.17} parent=0 // pred_region
    _
  $region13: #{roberta_classifier_forward.17} parent=0 // pred_fallthru
    _
  %p15 = scmp.eq.s32.totalorder 0, 0
  // Predicated region
  $region14: #{roberta_classifier_forward.17} parent=0 // pred_check
    %p16 = pneg %p15
  $region15: #{roberta_classifier_forward.17} parent=0 // pred_check_branch
    %18 = sbr.rel (%p16) target = $region17
  $region16: #{roberta_classifier_forward.17} parent=0 // pred_region
    %vm19 = vcmask 523264
    %20 = vst.msk [vmem:[#allocation2] sm:$0xff] %vm19, 0.0
    %21 = vst.msk [vmem:[#allocation2 + $0x8] sm:$0xff] %vm19, 0.0
  $region17: #{roberta_classifier_forward.17} parent=0 // pred_fallthru
    _
  %v22 = vld [vmem:[#allocation2] sm:$0xff]
  %v23 = vld [vmem:[#allocation2 + $0x8] sm:$0xff]
  %v24 = vld [vmem:[%s0] sm:$0xf]
  %v25 = vld [vmem:[%s0 + $0x4] sm:$0xf]
  %v26 = vld [vmem:[%s1] sm:$0xf]
  %v27 = vld [vmem:[%s1 + $0x4] sm:$0xf]
  %v28 = vld [vmem:[%s1 + $0x8] sm:$0xf]
  %v29 = vld [vmem:[%s1 + $0xc] sm:$0xf]
  %v32 = vunpack.c.l.b16 %v24
  %v33 = vunpack.c.l.b16 %v25
  %v34 = vpack.c.b16 %v33, %v32
  %v39 = vunpack.c.l.b16 %v26
  %v40 = vunpack.c.l.b16 %v27
  %v41 = vunpack.c.l.b16 %v28
  %v42 = vunpack.c.l.b16 %v29
  %v43 = vpack.c.b16 %v40, %v39
  %v44 = vpack.c.b16 %v42, %v41
  %vm47 = vcmask 261120
  %v49 = vsel %vm47, %v34, 0
  %51 = vmatprep.subr.bf16.mxu0 0
  %52 = vmatpush1.bf16.msra.mxu0 0
  %53 = vmatprep.subr.bf16.mxu0 0
  %54 = vmatpush1.bf16.msra.mxu0 0
  %55 = vmatprep.subr.bf16.mxu0 0
  %56 = vmatpush1.bf16.msra.mxu0 0
  %57 = vmatprep.subr.bf16.mxu0 0
  %58 = vmatpush1.bf16.msra.mxu0 0
  %59 = vmatprep.subr.bf16.mxu0 0
  %60 = vmatpush1.bf16.msra.mxu0 0
  %61 = vmatprep.subr.bf16.mxu0 0
  %62 = vmatpush1.bf16.msra.mxu0 0
  %63 = vmatprep.subr.bf16.mxu0 0
  %64 = vmatpush1.bf16.msra.mxu0 %v44
  %65 = vmatprep.subr.bf16.mxu0 0
  %66 = vmatpush1.bf16.msra.mxu0 %v43
  %67 = vmatprep.subr.bf16.mxu0 0
  %68 = vmatpush2.bf16.msra.mxu0 0
  %69 = vmatprep.subr.bf16.mxu0 0
  %70 = vmatpush2.bf16.msra.mxu0 0
  %71 = vmatprep.subr.bf16.mxu0 0
  %72 = vmatpush2.bf16.msra.mxu0 0
  %73 = vmatprep.subr.bf16.mxu0 0
  %74 = vmatpush2.bf16.msra.mxu0 0
  %75 = vmatprep.subr.bf16.mxu0 0
  %76 = vmatpush2.bf16.msra.mxu0 0
  %77 = vmatprep.subr.bf16.mxu0 0
  %78 = vmatpush2.bf16.msra.mxu0 0
  %79 = vmatprep.subr.bf16.mxu0 0
  %80 = vmatpush2.bf16.msra.mxu0 0
  %81 = vmatprep.subr.bf16.mxu0 0
  %82 = vmatpush2.bf16.msra.mxu0 0
  %83 = vmatprep.mubr.bf16.mxu0 0
  %84 = vmatmul.mubr.bf16.gmra.mxu0 %v49
  %v85 = vpop.f32.mrf.mxu0
  %v86 = vadd.f32 0.0, %v85
  %v87 = vpop.f32.mrf.mxu0
  %v88 = vpop.f32.mrf.mxu0
  %v89 = vadd.f32 0.0, %v88
  %v90 = vpop.f32.mrf.mxu0
  %91 = vdwg.mxu0
  %v92 = vadd.f32 %v22, %v86
  %v93 = vadd.f32 %v23, %v89
  %vm94 = vcmask 523264
  %95 = vst.msk [vmem:[#allocation2] sm:$0xff] %vm94, %v92
  %96 = vst.msk [vmem:[#allocation2 + $0x8] sm:$0xff] %vm94, %v93
  // Predicated region
  $region18: #{roberta_classifier_forward.17} parent=0 // pred_check
    %p97 = pneg %p15
  $region19: #{roberta_classifier_forward.17} parent=0 // pred_check_branch
    %99 = sbr.rel (%p97) target = $region21
  $region20: #{roberta_classifier_forward.17} parent=0 // pred_region
    %v100 = vld [vmem:[#allocation2] sm:$0xff]
    %v101 = vld [vmem:[#allocation2 + $0x8] sm:$0xff]
    %v102 = vld [vmem:[%s2] sm:$0x1]
    %v104 = vlaneseq
    %v105 = vshrl.u32 %v104, 7
    %v106 = vsub.s32 0, %v105
    %v107 = vrot.slane %v102, %v106
    %v109 = vadd.f32 %v100, %v107
    %v110 = vadd.f32 %v101, %v107
    %v111 = vmul.f32 %v109, 0.5
    %v112 = vmul.f32 %v110, 0.5
    %v113 = vmul.f32 %v109, 0.70710677
    %v114 = vmul.f32 %v110, 0.70710677
    %v115 = vand.u32 2147483647, %v113
    %v116 = vand.u32 2147483647, %v114
    %v117 = vmul.f32 %v115, 0.3275911
    %v118 = vmul.f32 %v116, 0.3275911
    %v119 = vadd.f32 %v117, 1.0
    %v120 = vadd.f32 %v118, 1.0
    %v121 = vrcp.pop %v119
    %v122 = vmul.f32 1.0, %v121
    %v123 = vrcp.pop %v120
    %v124 = vmul.f32 1.0, %v123
    %v125 = vmul.f32 %v122, 1.0614054
    %v126 = vmul.f32 %v124, 1.0614054
    %v127 = vadd.f32 %v125, -1.4531521
    %v128 = vadd.f32 %v126, -1.4531521
    %v129 = vmul.f32 %v127, %v122
    %v130 = vmul.f32 %v128, %v124
    %v131 = vadd.f32 %v129, 1.4214138
    %v132 = vadd.f32 %v130, 1.4214138
    %v133 = vmul.f32 %v131, %v122
    %v134 = vmul.f32 %v132, %v124
    %v135 = vadd.f32 %v133, -0.28449672
    %v136 = vadd.f32 %v134, -0.28449672
    %v137 = vmul.f32 %v135, %v122
    %v138 = vmul.f32 %v136, %v124
    %v139 = vadd.f32 %v137, 0.2548296
    %v140 = vadd.f32 %v138, 0.2548296
    %v141 = vmul.f32 %v139, %v122
    %v142 = vmul.f32 %v140, %v124
    %v143 = vsub.f32 0.0, %v115
    %v144 = vsub.f32 0.0, %v116
    %v145 = vmul.f32 %v143, %v115
    %v146 = vmul.f32 %v144, %v116
    %v147 = vmul.f32 %v145, 1.442695
    %v148 = vpow.pop %v147
    %v149 = vmul.f32 %v146, 1.442695
    %v150 = vpow.pop %v149
    %v151 = vmul.f32 %v141, %v148
    %v152 = vmul.f32 %v142, %v150
    %v153 = vsub.f32 1.0, %v151
    %v154 = vsub.f32 1.0, %v152
    %vm155 = vcmp.ge.f32.partialorder %v113, 0.0
    %vm156 = vcmp.ge.f32.partialorder %v114, 0.0
    %v157 = vsub.f32 0.0, %v153
    %v158 = vsub.f32 0.0, %v154
    %v159 = vsel %vm155, %v153, %v157
    %v160 = vsel %vm156, %v154, %v158
    %v161 = vadd.f32 %v159, 1.0
    %v162 = vadd.f32 %v160, 1.0
    %v163 = vmul.f32 %v111, %v161
    %v164 = vmul.f32 %v112, %v162
    %v165 = vpack.c.bf16 %v164, %v163
    %v167 = vunpack.c.l.b16 %v165
    %v168 = vunpack.c.h.b16 %v165
    %v169 = vpack.c.b16 %v167, %v167
    %v170 = vpack.c.b16 %v168, %v168
    %vm173 = vcmask 519168
    %174 = vst.msk [vmem:[%s3] sm:$0xf] %vm173, %v169
    %175 = vst.msk [vmem:[%s3 + $0x4] sm:$0xf] %vm173, %v170
  $region21: #{roberta_classifier_forward.17} parent=0 // pred_fallthru
    _
  // Predicated region
  $region22: #{roberta_classifier_forward.17} parent=0 // pred_check
    _
  $region23: #{roberta_classifier_forward.17} parent=0 // pred_check_branch
    %177 = sbr.rel (0) target = $region25
  $region24: #{roberta_classifier_forward.17} parent=0 // pred_region
    _
  $region25: #{roberta_classifier_forward.17} parent=0 // pred_fallthru
    _
  // Predicated region
  $region26: #{roberta_classifier_forward.17} parent=0 // pred_check
    _
  $region27: #{roberta_classifier_forward.17} parent=0 // pred_check_branch
    %179 = sbr.rel (0) target = $region29
  $region28: #{roberta_classifier_forward.17} parent=0 // pred_region
    _
  $region29: #{roberta_classifier_forward.17} parent=0 // pred_fallthru
    _

// kernel: roberta_classifier_forward.18
$region0: #{roberta_classifier_forward.18}
  #allocation0 [shape = 'u32[]', space=smem, size = 0x4, offset = 0x4, fixed_abs, tag = 'smem constant byte address 0x4 - core index']
  #allocation1 [shape = 'u32[144,128]{1,0:T(1,128)}', space=vmem, size = 0x12000, scoped, tag = 'internal scratch']
  #allocation2 [shape = 'f32[16,32]{1,0:T(8,128)}', space=vmem, size = 0x2000, scoped, tag = 'scratch operand']
  %s0 = inlined_call_operand.vmem [shape: bf16[16,64], index: 0, kind: input, shape index: {}]
  %s1 = inlined_call_operand.vmem [shape: bf16[64,32], index: 1, kind: input, shape index: {}]
  %s2 = inlined_call_operand.vmem [shape: f32[1,32], index: 2, kind: input, shape index: {}]
  %s3 = inlined_call_operand.vmem [shape: bf16[16,32], index: 3, kind: input, shape index: {}]
  %s4 = inlined_call_operand.vmem [shape: f32[1,32], index: 4, kind: input, shape index: {}]
  %s5 = inlined_call_operand.vmem [shape: f32[1,32], index: 5, kind: input, shape index: {}]
  %s6 = inlined_call_operand.vmem [shape: bf16[16,32], index: 6, kind: output, shape index: {}]
  %s7 = sld [smem:[#allocation0]]
  $region42: #{roberta_classifier_forward.18} parent=0
    _
  %s9 = ssub.s32 1, %s7
  %s10 = scalar_select 0, %s9, %s7
  // Predicated region
  $region2: #{roberta_classifier_forward.18} parent=0 // pred_check
    _
  $region3: #{roberta_classifier_forward.18} parent=0 // pred_check_branch
    %12 = sbr.rel (0) target = $region5
  $region4: #{roberta_classifier_forward.18} parent=0 // pred_region
    _
  $region5: #{roberta_classifier_forward.18} parent=0 // pred_fallthru
    _
  // Predicated region
  $region6: #{roberta_classifier_forward.18} parent=0 // pred_check
    _
  $region7: #{roberta_classifier_forward.18} parent=0 // pred_check_branch
    %14 = sbr.rel (0) target = $region9
  $region8: #{roberta_classifier_forward.18} parent=0 // pred_region
    _
  $region9: #{roberta_classifier_forward.18} parent=0 // pred_fallthru
    _
  // Predicated region
  $region10: #{roberta_classifier_forward.18} parent=0 // pred_check
    _
  $region11: #{roberta_classifier_forward.18} parent=0 // pred_check_branch
    %16 = sbr.rel (0) target = $region13
  $region12: #{roberta_classifier_forward.18} parent=0 // pred_region
    _
  $region13: #{roberta_classifier_forward.18} parent=0 // pred_fallthru
    _
  // Predicated region
  $region14: #{roberta_classifier_forward.18} parent=0 // pred_check
    _
  $region15: #{roberta_classifier_forward.18} parent=0 // pred_check_branch
    %18 = sbr.rel (0) target = $region17
  $region16: #{roberta_classifier_forward.18} parent=0 // pred_region
    _
  $region17: #{roberta_classifier_forward.18} parent=0 // pred_fallthru
    _
  // Predicated region
  $region18: #{roberta_classifier_forward.18} parent=0 // pred_check
    _
  $region19: #{roberta_classifier_forward.18} parent=0 // pred_check_branch
    %20 = sbr.rel (0) target = $region21
  $region20: #{roberta_classifier_forward.18} parent=0 // pred_region
    _
  $region21: #{roberta_classifier_forward.18} parent=0 // pred_fallthru
    _
  // Predicated region
  $region22: #{roberta_classifier_forward.18} parent=0 // pred_check
    _
  $region23: #{roberta_classifier_forward.18} parent=0 // pred_check_branch
    %22 = sbr.rel (0) target = $region25
  $region24: #{roberta_classifier_forward.18} parent=0 // pred_region
    _
  $region25: #{roberta_classifier_forward.18} parent=0 // pred_fallthru
    _
  %p24 = scmp.eq.s32.totalorder 0, 0
  // Predicated region
  $region26: #{roberta_classifier_forward.18} parent=0 // pred_check
    %p25 = pneg %p24
  $region27: #{roberta_classifier_forward.18} parent=0 // pred_check_branch
    %27 = sbr.rel (%p25) target = $region29
  $region28: #{roberta_classifier_forward.18} parent=0 // pred_region
    %vm28 = vcmask 261120
    %29 = vst.msk [vmem:[#allocation2] sm:$0xff] %vm28, 0.0
    %30 = vst.msk [vmem:[#allocation2 + $0x8] sm:$0xff] %vm28, 0.0
  $region29: #{roberta_classifier_forward.18} parent=0 // pred_fallthru
    _
  %v31 = vld [vmem:[#allocation2] sm:$0xff]
  %v32 = vld [vmem:[#allocation2 + $0x8] sm:$0xff]
  %v33 = vld [vmem:[%s0] sm:$0xf]
  %v34 = vld [vmem:[%s0 + $0x4] sm:$0xf]
  %v35 = vld [vmem:[%s1] sm:$0xf]
  %v36 = vld [vmem:[%s1 + $0x4] sm:$0xf]
  %v37 = vld [vmem:[%s1 + $0x8] sm:$0xf]
  %v38 = vld [vmem:[%s1 + $0xc] sm:$0xf]
  %v39 = vld [vmem:[%s1 + $0x10] sm:$0xf]
  %v40 = vld [vmem:[%s1 + $0x14] sm:$0xf]
  %v41 = vld [vmem:[%s1 + $0x18] sm:$0xf]
  %v42 = vld [vmem:[%s1 + $0x1c] sm:$0xf]
  %v45 = vunpack.c.l.b16 %v33
  %v46 = vunpack.c.l.b16 %v34
  %v47 = vpack.c.b16 %v46, %v45
  %v56 = vunpack.c.l.b16 %v35
  %v57 = vunpack.c.l.b16 %v36
  %v58 = vunpack.c.l.b16 %v37
  %v59 = vunpack.c.l.b16 %v38
  %v60 = vunpack.c.l.b16 %v39
  %v61 = vunpack.c.l.b16 %v40
  %v62 = vunpack.c.l.b16 %v41
  %v63 = vunpack.c.l.b16 %v42
  %v64 = vpack.c.b16 %v57, %v56
  %v65 = vpack.c.b16 %v59, %v58
  %v66 = vpack.c.b16 %v61, %v60
  %v67 = vpack.c.b16 %v63, %v62
  %vm72 = vcmask 523264
  %v74 = vsel %vm72, %v47, 0
  %76 = vmatprep.subr.bf16.mxu0 0
  %77 = vmatpush1.bf16.msra.mxu0 0
  %78 = vmatprep.subr.bf16.mxu0 0
  %79 = vmatpush1.bf16.msra.mxu0 0
  %80 = vmatprep.subr.bf16.mxu0 0
  %81 = vmatpush1.bf16.msra.mxu0 0
  %82 = vmatprep.subr.bf16.mxu0 0
  %83 = vmatpush1.bf16.msra.mxu0 0
  %84 = vmatprep.subr.bf16.mxu0 0
  %85 = vmatpush1.bf16.msra.mxu0 %v67
  %86 = vmatprep.subr.bf16.mxu0 0
  %87 = vmatpush1.bf16.msra.mxu0 %v66
  %88 = vmatprep.subr.bf16.mxu0 0
  %89 = vmatpush1.bf16.msra.mxu0 %v65
  %90 = vmatprep.subr.bf16.mxu0 0
  %91 = vmatpush1.bf16.msra.mxu0 %v64
  %92 = vmatprep.subr.bf16.mxu0 0
  %93 = vmatpush2.bf16.msra.mxu0 0
  %94 = vmatprep.subr.bf16.mxu0 0
  %95 = vmatpush2.bf16.msra.mxu0 0
  %96 = vmatprep.subr.bf16.mxu0 0
  %97 = vmatpush2.bf16.msra.mxu0 0
  %98 = vmatprep.subr.bf16.mxu0 0
  %99 = vmatpush2.bf16.msra.mxu0 0
  %100 = vmatprep.subr.bf16.mxu0 0
  %101 = vmatpush2.bf16.msra.mxu0 0
  %102 = vmatprep.subr.bf16.mxu0 0
  %103 = vmatpush2.bf16.msra.mxu0 0
  %104 = vmatprep.subr.bf16.mxu0 0
  %105 = vmatpush2.bf16.msra.mxu0 0
  %106 = vmatprep.subr.bf16.mxu0 0
  %107 = vmatpush2.bf16.msra.mxu0 0
  %108 = vmatprep.mubr.bf16.mxu0 0
  %109 = vmatmul.mubr.bf16.gmra.mxu0 %v74
  %v110 = vpop.f32.mrf.mxu0
  %v111 = vadd.f32 0.0, %v110
  %v112 = vpop.f32.mrf.mxu0
  %v113 = vpop.f32.mrf.mxu0
  %v114 = vadd.f32 0.0, %v113
  %v115 = vpop.f32.mrf.mxu0
  %116 = vdwg.mxu0
  %v117 = vadd.f32 %v31, %v111
  %v118 = vadd.f32 %v32, %v114
  %vm119 = vcmask 261120
  %120 = vst.msk [vmem:[#allocation2] sm:$0xff] %vm119, %v117
  %121 = vst.msk [vmem:[#allocation2 + $0x8] sm:$0xff] %vm119, %v118
  // Predicated region
  $region30: #{roberta_classifier_forward.18} parent=0 // pred_check
    %p122 = pneg %p24
  $region31: #{roberta_classifier_forward.18} parent=0 // pred_check_branch
    %124 = sbr.rel (%p122) target = $region33
  $region32: #{roberta_classifier_forward.18} parent=0 // pred_region
    %v125 = vld [vmem:[#allocation2] sm:$0xff]
    %v126 = vld [vmem:[#allocation2 + $0x8] sm:$0xff]
    %v127 = vld [vmem:[%s2] sm:$0x1]
    %v129 = vlaneseq
    %v130 = vshrl.u32 %v129, 7
    %v131 = vsub.s32 0, %v130
    %v132 = vrot.slane %v127, %v131
    %v134 = vadd.f32 %v125, %v132
    %v135 = vadd.f32 %v126, %v132
    %v136 = vld [vmem:[%s3] sm:$0xf]
    %v137 = vld [vmem:[%s3 + $0x4] sm:$0xf]
    %v138 = vunpack.c.l.bf16 %v136
    %v139 = vunpack.c.l.bf16 %v137
    %v140 = vadd.f32 %v134, %v138
    %v141 = vadd.f32 %v135, %v139
    %v142 = vsel %vm119, %v140, 0.0
    %143 = vadd.xlane.f32.xlu0 %v142
    %v144 = vpop.xlane.xlu0 %143
    %v145 = vsel %vm119, %v141, 0.0
    %146 = vadd.xlane.f32.xlu0 %v145
    %v147 = vpop.xlane.xlu0 %146
    %v148 = vrcp.pop 32.0
    %v149 = vmul.f32 %v144, %v148
    %v150 = vmul.f32 %v147, %v148
    %v151 = vsub.f32 %v140, %v149
    %v152 = vsub.f32 %v141, %v150
    %v153 = vmul.f32 %v151, %v151
    %v154 = vmul.f32 %v152, %v152
    %v155 = vsel %vm119, %v153, 0.0
    %156 = vadd.xlane.f32.xlu0 %v155
    %v157 = vpop.xlane.xlu0 %156
    %v158 = vsel %vm119, %v154, 0.0
    %159 = vadd.xlane.f32.xlu0 %v158
    %v160 = vpop.xlane.xlu0 %159
    %v161 = vmul.f32 %v157, %v148
    %v162 = vmul.f32 %v160, %v148
    %v163 = vadd.f32 %v161, 1e-05
    %v164 = vadd.f32 %v162, 1e-05
    %v165 = vrsqrt.pop %v163
    %v166 = vrsqrt.pop %v164
    %v167 = vmul.f32 %v151, %v165
    %v168 = vmul.f32 %v152, %v166
    %v169 = vld [vmem:[%s4] sm:$0x1]
    %v171 = vlaneseq
    %v172 = vshrl.u32 %v171, 7
    %v173 = vsub.s32 0, %v172
    %v174 = vrot.slane %v169, %v173
    %v176 = vmul.f32 %v167, %v174
    %v177 = vmul.f32 %v168, %v174
    %v178 = vld [vmem:[%s5] sm:$0x1]
    %v180 = vlaneseq
    %v181 = vshrl.u32 %v180, 7
    %v182 = vsub.s32 0, %v181
    %v183 = vrot.slane %v178, %v182
    %v185 = vadd.f32 %v176, %v183
    %v186 = vadd.f32 %v177, %v183
    %v187 = vpack.c.bf16 %v186, %v185
    %v189 = vunpack.c.l.b16 %v187
    %v190 = vunpack.c.h.b16 %v187
    %v191 = vpack.c.b16 %v189, %v189
    %v192 = vpack.c.b16 %v190, %v190
    %vm195 = vcmask 257024
    %196 = vst.msk [vmem:[%s6] sm:$0xf] %vm195, %v191
    %197 = vst.msk [vmem:[%s6 + $0x4] sm:$0xf] %vm195, %v192
  $region33: #{roberta_classifier_forward.18} parent=0 // pred_fallthru
    _
  // Predicated region
  $region34: #{roberta_classifier_forward.18} parent=0 // pred_check
    _
  $region35: #{roberta_classifier_forward.18} parent=0 // pred_check_branch
    %199 = sbr.rel (0) target = $region37
  $region36: #{roberta_classifier_forward.18} parent=0 // pred_region
    _
  $region37: #{roberta_classifier_forward.18} parent=0 // pred_fallthru
    _
  // Predicated region
  $region38: #{roberta_classifier_forward.18} parent=0 // pred_check
    _
  $region39: #{roberta_classifier_forward.18} parent=0 // pred_check_branch
    %201 = sbr.rel (0) target = $region41
  $region40: #{roberta_classifier_forward.18} parent=0 // pred_region
    _
  $region41: #{roberta_classifier_forward.18} parent=0 // pred_fallthru
    _

// kernel: roberta_classifier_forward.24
$region0: #{roberta_classifier_forward.24}
  #allocation0 [shape = 'u32[]', space=smem, size = 0x4, offset = 0x4, fixed_abs, tag = 'smem constant byte address 0x4 - core index']
  #allocation1 [shape = 'u32[144,128]{1,0:T(1,128)}', space=vmem, size = 0x12000, scoped, tag = 'internal scratch']
  #allocation2 [shape = 'f32[8,32]{1,0:T(8,128)}', space=vmem, size = 0x1000, scoped, tag = 'scratch operand']
  %s0 = inlined_call_operand.vmem [shape: bf16[8,32], index: 0, kind: input, shape index: {}]
  %s1 = inlined_call_operand.vmem [shape: bf16[32,32], index: 1, kind: input, shape index: {}]
  %s2 = inlined_call_operand.vmem [shape: f32[1,32], index: 2, kind: input, shape index: {}]
  %s3 = inlined_call_operand.vmem [shape: bf16[8,32], index: 3, kind: output, shape index: {}]
  %s4 = sld [smem:[#allocation0]]
  $region30: #{roberta_classifier_forward.24} parent=0
    _
  %s6 = ssub.s32 1, %s4
  %s7 = scalar_select 0, %s6, %s4
  // Predicated region
  $region2: #{roberta_classifier_forward.24} parent=0 // pred_check
    _
  $region3: #{roberta_classifier_forward.24} parent=0 // pred_check_branch
    %9 = sbr.rel (0) target = $region5
  $region4: #{roberta_classifier_forward.24} parent=0 // pred_region
    _
  $region5: #{roberta_classifier_forward.24} parent=0 // pred_fallthru
    _
  // Predicated region
  $region6: #{roberta_classifier_forward.24} parent=0 // pred_check
    _
  $region7: #{roberta_classifier_forward.24} parent=0 // pred_check_branch
    %11 = sbr.rel (0) target = $region9
  $region8: #{roberta_classifier_forward.24} parent=0 // pred_region
    _
  $region9: #{roberta_classifier_forward.24} parent=0 // pred_fallthru
    _
  // Predicated region
  $region10: #{roberta_classifier_forward.24} parent=0 // pred_check
    _
  $region11: #{roberta_classifier_forward.24} parent=0 // pred_check_branch
    %13 = sbr.rel (0) target = $region13
  $region12: #{roberta_classifier_forward.24} parent=0 // pred_region
    _
  $region13: #{roberta_classifier_forward.24} parent=0 // pred_fallthru
    _
  %p15 = scmp.eq.s32.totalorder 0, 0
  // Predicated region
  $region14: #{roberta_classifier_forward.24} parent=0 // pred_check
    %p16 = pneg %p15
  $region15: #{roberta_classifier_forward.24} parent=0 // pred_check_branch
    %18 = sbr.rel (%p16) target = $region17
  $region16: #{roberta_classifier_forward.24} parent=0 // pred_region
    %vm19 = vcmask 261120
    %20 = vst.msk [vmem:[#allocation2] sm:$0xff] %vm19, 0.0
  $region17: #{roberta_classifier_forward.24} parent=0 // pred_fallthru
    _
  %v21 = vld [vmem:[#allocation2] sm:$0xff]
  %v22 = vld [vmem:[%s0] sm:$0xf]
  %v23 = vld [vmem:[%s1] sm:$0xf]
  %v24 = vld [vmem:[%s1 + $0x4] sm:$0xf]
  %v25 = vld [vmem:[%s1 + $0x8] sm:$0xf]
  %v26 = vld [vmem:[%s1 + $0xc] sm:$0xf]
  %v31 = vunpack.c.l.b16 %v23
  %v32 = vunpack.c.l.b16 %v24
  %v33 = vunpack.c.l.b16 %v25
  %v34 = vunpack.c.l.b16 %v26
  %v35 = vpack.c.b16 %v32, %v31
  %v36 = vpack.c.b16 %v34, %v33
  %vm39 = vcmask 261120
  %v41 = vsel %vm39, %v22, 0
  %43 = vmatprep.subr.bf16.mxu0 0
  %44 = vmatpush1.bf16.msra.mxu0 0
  %45 = vmatprep.subr.bf16.mxu0 0
  %46 = vmatpush1.bf16.msra.mxu0 0
  %47 = vmatprep.subr.bf16.mxu0 0
  %48 = vmatpush1.bf16.msra.mxu0 0
  %49 = vmatprep.subr.bf16.mxu0 0
  %50 = vmatpush1.bf16.msra.mxu0 0
  %51 = vmatprep.subr.bf16.mxu0 0
  %52 = vmatpush1.bf16.msra.mxu0 0
  %53 = vmatprep.subr.bf16.mxu0 0
  %54 = vmatpush1.bf16.msra.mxu0 0
  %55 = vmatprep.subr.bf16.mxu0 0
  %56 = vmatpush1.bf16.msra.mxu0 %v36
  %57 = vmatprep.subr.bf16.mxu0 0
  %58 = vmatpush1.bf16.msra.mxu0 %v35
  %59 = vmatprep.subr.bf16.mxu0 0
  %60 = vmatpush2.bf16.msra.mxu0 0
  %61 = vmatprep.subr.bf16.mxu0 0
  %62 = vmatpush2.bf16.msra.mxu0 0
  %63 = vmatprep.subr.bf16.mxu0 0
  %64 = vmatpush2.bf16.msra.mxu0 0
  %65 = vmatprep.subr.bf16.mxu0 0
  %66 = vmatpush2.bf16.msra.mxu0 0
  %67 = vmatprep.subr.bf16.mxu0 0
  %68 = vmatpush2.bf16.msra.mxu0 0
  %69 = vmatprep.subr.bf16.mxu0 0
  %70 = vmatpush2.bf16.msra.mxu0 0
  %71 = vmatprep.subr.bf16.mxu0 0
  %72 = vmatpush2.bf16.msra.mxu0 0
  %73 = vmatprep.subr.bf16.mxu0 0
  %74 = vmatpush2.bf16.msra.mxu0 0
  %75 = vmatprep.mubr.bf16.mxu0 0
  %76 = vmatmul.mubr.bf16.gmra.mxu0 %v41
  %v77 = vpop.f32.mrf.mxu0
  %v78 = vadd.f32 0.0, %v77
  %v79 = vpop.f32.mrf.mxu0
  %v80 = vpop.f32.mrf.mxu0
  %v81 = vpop.f32.mrf.mxu0
  %82 = vdwg.mxu0
  %v83 = vadd.f32 %v21, %v78
  %84 = vst.msk [vmem:[#allocation2] sm:$0xff] %vm39, %v83
  // Predicated region
  $region18: #{roberta_classifier_forward.24} parent=0 // pred_check
    %p85 = pneg %p15
  $region19: #{roberta_classifier_forward.24} parent=0 // pred_check_branch
    %87 = sbr.rel (%p85) target = $region21
  $region20: #{roberta_classifier_forward.24} parent=0 // pred_region
    %v88 = vld [vmem:[#allocation2] sm:$0xff]
    %v89 = vld [vmem:[%s2] sm:$0x1]
    %v91 = vlaneseq
    %v92 = vshrl.u32 %v91, 7
    %v93 = vsub.s32 0, %v92
    %v94 = vrot.slane %v89, %v93
    %v96 = vadd.f32 %v88, %v94
    %v97 = vmax.f32 %v96, 0.0
    %v98 = vpack.c.bf16 %v97, %v97
    %vm99 = vcmask 257024
    %100 = vst.msk [vmem:[%s3] sm:$0xf] %vm99, %v98
  $region21: #{roberta_classifier_forward.24} parent=0 // pred_fallthru
    _
  // Predicated region
  $region22: #{roberta_classifier_forward.24} parent=0 // pred_check
    _
  $region23: #{roberta_classifier_forward.24} parent=0 // pred_check_branch
    %102 = sbr.rel (0) target = $region25
  $region24: #{roberta_classifier_forward.24} parent=0 // pred_region
    _
  $region25: #{roberta_classifier_forward.24} parent=0 // pred_fallthru
    _
  // Predicated region
  $region26: #{roberta_classifier_forward.24} parent=0 // pred_check
    _
  $region27: #{roberta_classifier_forward.24} parent=0 // pred_check_branch
    %104 = sbr.rel (0) target = $region29
  $region28: #{roberta_classifier_forward.24} parent=0 // pred_region
    _
  $region29: #{roberta_classifier_forward.24} parent=0 // pred_fallthru
    _

// kernel: roberta_classifier_forward.25
$region0: #{roberta_classifier_forward.25}
  #allocation0 [shape = 'u32[]', space=smem, size = 0x4, offset = 0x4, fixed_abs, tag = 'smem constant byte address 0x4 - core index']
  #allocation1 [shape = 'u32[144,128]{1,0:T(1,128)}', space=vmem, size = 0x12000, scoped, tag = 'internal scratch']
  #allocation2 [shape = 'f32[8,3]{1,0:T(8,128)}', space=vmem, size = 0x1000, scoped, tag = 'scratch operand']
  %s0 = inlined_call_operand.vmem [shape: bf16[8,32], index: 0, kind: input, shape index: {}]
  %s1 = inlined_call_operand.vmem [shape: bf16[32,3], index: 1, kind: input, shape index: {}]
  %s2 = inlined_call_operand.vmem [shape: f32[1,3], index: 2, kind: input, shape index: {}]
  %s3 = inlined_call_operand.vmem [shape: f32[8,3], index: 3, kind: output, shape index: {}]
  %s4 = sld [smem:[#allocation0]]
  $region30: #{roberta_classifier_forward.25} parent=0
    _
  %s6 = ssub.s32 1, %s4
  %s7 = scalar_select 0, %s6, %s4
  // Predicated region
  $region2: #{roberta_classifier_forward.25} parent=0 // pred_check
    _
  $region3: #{roberta_classifier_forward.25} parent=0 // pred_check_branch
    %9 = sbr.rel (0) target = $region5
  $region4: #{roberta_classifier_forward.25} parent=0 // pred_region
    _
  $region5: #{roberta_classifier_forward.25} parent=0 // pred_fallthru
    _
  // Predicated region
  $region6: #{roberta_classifier_forward.25} parent=0 // pred_check
    _
  $region7: #{roberta_classifier_forward.25} parent=0 // pred_check_branch
    %11 = sbr.rel (0) target = $region9
  $region8: #{roberta_classifier_forward.25} parent=0 // pred_region
    _
  $region9: #{roberta_classifier_forward.25} parent=0 // pred_fallthru
    _
  // Predicated region
  $region10: #{roberta_classifier_forward.25} parent=0 // pred_check
    _
  $region11: #{roberta_classifier_forward.25} parent=0 // pred_check_branch
    %13 = sbr.rel (0) target = $region13
  $region12: #{roberta_classifier_forward.25} parent=0 // pred_region
    _
  $region13: #{roberta_classifier_forward.25} parent=0 // pred_fallthru
    _
  %p15 = scmp.eq.s32.totalorder 0, 0
  // Predicated region
  $region14: #{roberta_classifier_forward.25} parent=0 // pred_check
    %p16 = pneg %p15
  $region15: #{roberta_classifier_forward.25} parent=0 // pred_check_branch
    %18 = sbr.rel (%p16) target = $region17
  $region16: #{roberta_classifier_forward.25} parent=0 // pred_region
    %vm19 = vcmask 23552
    %20 = vst.msk [vmem:[#allocation2] sm:$0xff] %vm19, 0.0
  $region17: #{roberta_classifier_forward.25} parent=0 // pred_fallthru
    _
  %v21 = vld [vmem:[#allocation2] sm:$0xff]
  %v22 = vld [vmem:[%s0] sm:$0xf]
  %v23 = vld [vmem:[%s1] sm:$0xf]
  %v24 = vld [vmem:[%s1 + $0x4] sm:$0xf]
  %v25 = vld [vmem:[%s1 + $0x8] sm:$0xf]
  %v26 = vld [vmem:[%s1 + $0xc] sm:$0xf]
  %v31 = vunpack.c.l.b16 %v23
  %v32 = vunpack.c.l.b16 %v24
  %v33 = vunpack.c.l.b16 %v25
  %v34 = vunpack.c.l.b16 %v26
  %v35 = vpack.c.b16 %v32, %v31
  %v36 = vpack.c.b16 %v34, %v33
  %vm39 = vcmask 261120
  %v41 = vsel %vm39, %v22, 0
  %43 = vmatprep.subr.bf16.mxu0 0
  %44 = vmatpush1.bf16.msra.mxu0 0
  %45 = vmatprep.subr.bf16.mxu0 0
  %46 = vmatpush1.bf16.msra.mxu0 0
  %47 = vmatprep.subr.bf16.mxu0 0
  %48 = vmatpush1.bf16.msra.mxu0 0
  %49 = vmatprep.subr.bf16.mxu0 0
  %50 = vmatpush1.bf16.msra.mxu0 0
  %51 = vmatprep.subr.bf16.mxu0 0
  %52 = vmatpush1.bf16.msra.mxu0 0
  %53 = vmatprep.subr.bf16.mxu0 0
  %54 = vmatpush1.bf16.msra.mxu0 0
  %55 = vmatprep.subr.bf16.mxu0 0
  %56 = vmatpush1.bf16.msra.mxu0 %v36
  %57 = vmatprep.subr.bf16.mxu0 0
  %58 = vmatpush1.bf16.msra.mxu0 %v35
  %59 = vmatprep.subr.bf16.mxu0 0
  %60 = vmatpush2.bf16.msra.mxu0 0
  %61 = vmatprep.subr.bf16.mxu0 0
  %62 = vmatpush2.bf16.msra.mxu0 0
  %63 = vmatprep.subr.bf16.mxu0 0
  %64 = vmatpush2.bf16.msra.mxu0 0
  %65 = vmatprep.subr.bf16.mxu0 0
  %66 = vmatpush2.bf16.msra.mxu0 0
  %67 = vmatprep.subr.bf16.mxu0 0
  %68 = vmatpush2.bf16.msra.mxu0 0
  %69 = vmatprep.subr.bf16.mxu0 0
  %70 = vmatpush2.bf16.msra.mxu0 0
  %71 = vmatprep.subr.bf16.mxu0 0
  %72 = vmatpush2.bf16.msra.mxu0 0
  %73 = vmatprep.subr.bf16.mxu0 0
  %74 = vmatpush2.bf16.msra.mxu0 0
  %75 = vmatprep.mubr.bf16.mxu0 0
  %76 = vmatmul.mubr.bf16.gmra.mxu0 %v41
  %v77 = vpop.f32.mrf.mxu0
  %v78 = vadd.f32 0.0, %v77
  %v79 = vpop.f32.mrf.mxu0
  %v80 = vpop.f32.mrf.mxu0
  %v81 = vpop.f32.mrf.mxu0
  %82 = vdwg.mxu0
  %v83 = vadd.f32 %v21, %v78
  %vm84 = vcmask 23552
  %85 = vst.msk [vmem:[#allocation2] sm:$0xff] %vm84, %v83
  // Predicated region
  $region18: #{roberta_classifier_forward.25} parent=0 // pred_check
    %p86 = pneg %p15
  $region19: #{roberta_classifier_forward.25} parent=0 // pred_check_branch
    %88 = sbr.rel (%p86) target = $region21
  $region20: #{roberta_classifier_forward.25} parent=0 // pred_region
    %v89 = vld [vmem:[#allocation2] sm:$0xff]
    %v90 = vld [vmem:[%s2] sm:$0x1]
    %v92 = vlaneseq
    %v93 = vshrl.u32 %v92, 7
    %v94 = vsub.s32 0, %v93
    %v95 = vrot.slane %v90, %v94
    %v97 = vadd.f32 %v89, %v95
    %98 = vst.msk [vmem:[%s3] sm:$0xff] %vm84, %v97
  $region21: #{roberta_classifier_forward.25} parent=0 // pred_fallthru
    _
  // Predicated region
  $region22: #{roberta_classifier_forward.25} parent=0 // pred_check
    _
  $region23: #{roberta_classifier_forward.25} parent=0 // pred_check_branch
    %100 = sbr.rel (0) target = $region25
  $region24: #{roberta_classifier_forward.25} parent=0 // pred_region
    _
  $region25: #{roberta_classifier_forward.25} parent=0 // pred_fallthru
    _
  // Predicated region
  $region26: #{roberta_classifier_forward.25} parent=0 // pred_check
    _
  $region27: #{roberta_classifier_forward.25} parent=0 // pred_check_branch
    %102 = sbr.rel (0) target = $region29
  $region28: #{roberta_classifier_forward.25} parent=0 // pred_region
    _
  $region29: #{roberta_classifier_forward.25} parent=0 // pred_fallthru
    _

</llo_original>
